<compile_context>
chip_gen: v7x
topology: tpu7x:2x2x1
jax: 0.10.0
libtpu: 0.0.40
codegen_flags: <defaults>
</compile_context>

<pallas_src>
import numpy as np
import jax
import jax.numpy as jnp
from jax import lax
from jax.experimental import pallas as pl
from jax.experimental.pallas import tpu as pltpu

EPS = 1e-05

# Sub-pixel decomposition tables for ConvTranspose2d(k=4, s=2, p=1):
# output parity r (row) / s (col) uses padded-frame offsets ROFF[.] with kernel taps KH[.]
ROFF = ((1, 0), (2, 1))
KH = ((1, 3), (0, 2))


# ----------------------------------------------------------------------------
# Pallas kernel factory: one grid step == one batch element, everything fused.
# ----------------------------------------------------------------------------
def _make_decoder_kernel(H, W, He, We, Cin, Cout):
    P, Pe = W + 2, We + 2            # row strides of the flat W-padded frames
    LH, LHe = H * P, He * Pe         # flat lengths of conv / trans-conv outputs
    dh0, dw0 = (He - H) // 2, (We - W) // 2   # F.pad offsets (top/left halves)
    inv_hw = 1.0 / (H * W)
    inv_hw1 = 1.0 / (H * W - 1)      # torch.std unbiased (ddof=1)

    def kernel(xp_ref, ep_ref, mu_ref, sig_ref, mask_ref,
               w1_ref, w2_ref, wt_ref, bt_ref, wo_ref, y_ref, z_ref):
        Lx = xp_ref.shape[2]
        LE = ep_ref.shape[2]

        mask = mask_ref[...]          # (1, LH): 0 at the 2 pad columns of every row
        mu_s = mu_ref[0]              # (Cin, 1)
        sig_s = sig_ref[0]            # (Cin, 1)

        def conv3x3(src, w_ref):
            # src: (Cin, >= (H+2)*P + 2) flat zero-padded input, bf16.
            # All 9 taps stacked along K -> a single (Cin,9Cin)@(9Cin,LH) MXU call.
            taps = [src[:, kh * P + kw: kh * P + kw + LH]
                    for kh in range(3) for kw in range(3)]
            kblk = jnp.concatenate(taps, axis=0)               # (9*Cin, LH) bf16
            return jnp.dot(w_ref[...], kblk, preferred_element_type=jnp.float32)

        def adain(h):
            # AdaIN with torch.std semantics; pad columns masked out of the stats.
            hm = h * mask
            mu_c = jnp.sum(hm, axis=1, keepdims=True) * inv_hw
            d = (hm - mu_c) * mask
            sd = jnp.sqrt(jnp.sum(d * d, axis=1, keepdims=True) * inv_hw1) + EPS
            a = sig_s * pl.reciprocal(sd, approx=True)         # EUP, ~free
            b = mu_s - mu_c * a
            return hm * a + b   # NOTE: pad columns hold `b`; re-mask before reuse

        # conv_1 -> AdaIN -> ReLU
        h = jnp.maximum(adain(conv3x3(xp_ref[0], w1_ref)), 0.0)

        # flat re-pad for conv_2:  zeros | masked h | zeros
        pad2 = jnp.concatenate(
            [jnp.zeros((Cin, P + 1), jnp.bfloat16),
             (h * mask).astype(jnp.bfloat16),
             jnp.zeros((Cin, Lx - (P + 1) - LH), jnp.bfloat16)], axis=1)

        # conv_2 -> AdaIN
        h = adain(conv3x3(pad2, w2_ref))

        # F.pad to (He, We) + 1-px zero border for the transposed conv (x half)
        if W == We:                                   # common case: contiguous placement
            off = (1 + dh0) * Pe + 1
            xe = jnp.concatenate(
                [jnp.zeros((Cin, off), jnp.bfloat16),
                 (h * mask).astype(jnp.bfloat16),
                 jnp.zeros((Cin, LE - off - LH), jnp.bfloat16)], axis=1)
        else:                                         # general F.pad path (row by row)
            hb = h.astype(jnp.bfloat16)
            pieces = [jnp.zeros((Cin, (1 + dh0) * Pe + 1 + dw0), jnp.bfloat16)]
            for i in range(H):
                pieces.append(hb[:, i * P: i * P + W])
                if i + 1 < H:
                    pieces.append(jnp.zeros((Cin, Pe - W), jnp.bfloat16))
            pieces.append(jnp.zeros(
                (Cin, LE - (dh0 + H) * Pe - 1 - dw0 - W), jnp.bfloat16))
            xe = jnp.concatenate(pieces, axis=1)

        # ConvTranspose2d(2*Cin, Cout, 4, 2, 1): a shared 18-tap (enc + x) im2col
        # block, then one (Cout, 18*Cin) @ (18*Cin, LHe) matmul per output parity.
        e = ep_ref[0]                                  # (Cin, LE) bf16
        taps = []
        for src in (e, xe):
            for ro in range(3):
                for co in range(3):
                    d = ro * Pe + co
                    taps.append(src[:, d: d + LHe])
        kblk = jnp.concatenate(taps, axis=0)           # (18*Cin, LHe) bf16
        bias = jnp.broadcast_to(bt_ref[...], (Cout, LHe))   # hoisted out of the loop
        wo = wo_ref[...]                               # (3, Cout) bf16
        for rs in range(4):
            acc = jnp.dot(wt_ref[rs], kblk, preferred_element_type=jnp.float32) + bias
            y = jnp.maximum(acc, 0.0)                  # ReLU
            y_ref[0, rs] = y
            # extra output: 1x1 conv -> tanh (always computed; wrapper drops if unused)
            z_ref[0, rs] = jnp.tanh(
                jnp.dot(wo, y.astype(jnp.bfloat16), preferred_element_type=jnp.float32))

    return kernel


# ----------------------------------------------------------------------------
# Parameter init / packing (deterministic, synthetic)
# ----------------------------------------------------------------------------
def init_params(key, in_channels, out_channels):
    k1, k2, k3, k4, k5 = jax.random.split(key, 5)
    s1 = 1.0 / np.sqrt(in_channels * 9)
    st = 1.0 / np.sqrt(2 * in_channels * 16)
    return dict(
        w1=jax.random.normal(k1, (in_channels, in_channels, 3, 3), jnp.float32) * s1,
        w2=jax.random.normal(k2, (in_channels, in_channels, 3, 3), jnp.float32) * s1,
        wt=jax.random.normal(k3, (2 * in_channels, out_channels, 4, 4), jnp.float32) * st,
        bt=jax.random.normal(k4, (out_channels,), jnp.float32) * 0.1,
        wo=jax.random.normal(k5, (3, out_channels, 1, 1), jnp.float32)
           * (1.0 / np.sqrt(out_channels)),
    )


def _pack_params(params, Cin, Cout):
    # 3x3 convs: (out, in, kh, kw) -> (out, kh, kw, in) -> (Cout, 9*Cin), K-stacked taps
    w1p = np.asarray(params['w1']).transpose(0, 2, 3, 1).reshape(Cin, 9 * Cin)
    w2p = np.asarray(params['w2']).transpose(0, 2, 3, 1).reshape(Cin, 9 * Cin)

    # transposed conv: per output parity (r,s), scatter the 2x2 used taps of each
    # half (enc first, x second) into a (Cout, 18*Cin) matrix indexed by the shared
    # 9-tap (ro, co) im2col layout (unused tap groups stay zero).
    wt = np.asarray(params['wt'])                       # (2*Cin, Cout, 4, 4)
    wtp = np.zeros((4, Cout, 18 * Cin), np.float32)
    for r in range(2):
        for s in range(2):
            rs = 2 * r + s
            for a in range(2):
                for b in range(2):
                    kh, kw = KH[r][a], KH[s][b]
                    t = ROFF[r][a] * 3 + ROFF[s][b]
                    wtp[rs, :, t * Cin:(t + 1) * Cin] = wt[:Cin, :, kh, kw].T
                    wtp[rs, :, (9 + t) * Cin:(10 + t) * Cin] = wt[Cin:, :, kh, kw].T

    btp = np.asarray(params['bt']).reshape(Cout, 1).astype(np.float32)
    wop = np.asarray(params['wo'])[:, :, 0, 0]          # (3, Cout)
    return (jnp.asarray(w1p, jnp.bfloat16), jnp.asarray(w2p, jnp.bfloat16),
            jnp.asarray(wtp, jnp.bfloat16), jnp.asarray(btp, jnp.float32),
            jnp.asarray(wop, jnp.bfloat16))


# ----------------------------------------------------------------------------
# Wrapper (NCHW in / NCHW out, like the PyTorch module)
# ----------------------------------------------------------------------------
def decoder_block_forward(x, enc_x, multi_scale, mu_style, sigma_style, params):
    N, Cin, H, W = x.shape
    _, _, He, We = enc_x.shape
    assert He >= H and We >= W, "enc_x must be at least as large spatially"
    Cout = params['bt'].shape[0]
    P, Pe = W + 2, We + 2
    LH, LHe = H * P, He * Pe
    Lx, LE = (H + 3) * P, (He + 3) * Pe     # +1 extra bottom row as tap slack

    # channels-first, flat, W-padded inputs (lane axis = flattened spatial)
    xp = jnp.pad(x, ((0, 0), (0, 0), (1, 2), (1, 1))).reshape(N, Cin, Lx).astype(jnp.bfloat16)
    ep = jnp.pad(enc_x, ((0, 0), (0, 0), (1, 2), (1, 1))).reshape(N, Cin, LE).astype(jnp.bfloat16)
    mu = mu_style.reshape(N, Cin, 1).astype(jnp.float32)
    sig = sigma_style.reshape(N, Cin, 1).astype(jnp.float32)
    colmask = jnp.asarray(
        (np.arange(LH) % P < W).astype(np.float32).reshape(1, LH))
    w1p, w2p, wtp, btp, wop = _pack_params(params, Cin, Cout)

    kernel = _make_decoder_kernel(H, W, He, We, Cin, Cout)

    grid_spec = pltpu.PrefetchScalarGridSpec(
        num_scalar_prefetch=0,
        grid=(N,),
        in_specs=[
            pl.BlockSpec((1, Cin, Lx), lambda n: (n, 0, 0)),         # padded flat x
            pl.BlockSpec((1, Cin, LE), lambda n: (n, 0, 0)),         # padded flat enc_x
            pl.BlockSpec((1, Cin, 1), lambda n: (n, 0, 0)),          # mu_style
            pl.BlockSpec((1, Cin, 1), lambda n: (n, 0, 0)),          # sigma_style
            pl.BlockSpec((1, LH), lambda n: (0, 0)),                 # valid-column mask
            pl.BlockSpec((Cin, 9 * Cin), lambda n: (0, 0)),          # conv_1 packed taps
            pl.BlockSpec((Cin, 9 * Cin), lambda n: (0, 0)),          # conv_2 packed taps
            pl.BlockSpec((4, Cout, 18 * Cin), lambda n: (0, 0, 0)),  # tr_conv per-parity
            pl.BlockSpec((Cout, 1), lambda n: (0, 0)),               # tr_conv bias
            pl.BlockSpec((3, Cout), lambda n: (0, 0)),               # conv_out 1x1
        ],
        out_specs=(pl.BlockSpec((1, 4, Cout, LHe), lambda n: (n, 0, 0, 0)),
                   pl.BlockSpec((1, 4, 3, LHe), lambda n: (n, 0, 0, 0))),
    )

    y4, z4 = pl.pallas_call(
        kernel,
        out_shape=(jax.ShapeDtypeStruct((N, 4, Cout, LHe), jnp.float32),
                   jax.ShapeDtypeStruct((N, 4, 3, LHe), jnp.float32)),
        grid_spec=grid_spec,
        compiler_params=pltpu.CompilerParams(dimension_semantics=("parallel",)),
    )(xp, ep, mu, sig, colmask, w1p, w2p, wtp, btp, wop)

    def unpack(t, C):
        # (N, rs, C, He*Pe) -> drop the 2 pad cols, interleave 2x2 parities -> NCHW
        t = t.reshape(N, 2, 2, C, He, Pe)[..., :We]       # (N, r, s, C, He, We)
        return t.transpose(0, 3, 4, 1, 5, 2).reshape(N, C, 2 * He, 2 * We)

    y = unpack(y4, Cout)
    return (y, unpack(z4, 3)) if multi_scale else (y, None)


# ----------------------------------------------------------------------------
# Pure-JAX reference (mirrors the PyTorch forward exactly)
# ----------------------------------------------------------------------------
def _ref_forward(x, enc_x, multi_scale, mu_style, sigma_style, params):
    Pr = lax.Precision.HIGHEST

    def conv(inp, w, pad):
        return lax.conv_general_dilated(
            inp, w, (1, 1), [(pad, pad), (pad, pad)],
            dimension_numbers=('NCHW', 'OIHW', 'NCHW'), precision=Pr)

    def adain(c):
        mu = jnp.mean(c, axis=(2, 3), keepdims=True)
        sd = jnp.std(c, axis=(2, 3), ddof=1, keepdims=True) + EPS
        return (c - mu) / sd * sigma_style + mu_style

    h = conv(x, params['w1'], 1)
    h = jnp.maximum(adain(h), 0.0)
    h = conv(h, params['w2'], 1)
    h = adain(h)
    dh = enc_x.shape[2] - h.shape[2]
    dw = enc_x.shape[3] - h.shape[3]
    if dh > 0 or dw > 0:
        h = jnp.pad(h, ((0, 0), (0, 0),
                        (dh // 2, dh - dh // 2), (dw // 2, dw - dw // 2)))
    c = jnp.concatenate([enc_x, h], axis=1)
    w_rot = jnp.flip(params['wt'], (2, 3)).transpose(1, 0, 2, 3)  # OIHW, flipped
    y = lax.conv_general_dilated(
        c, w_rot, (1, 1), [(2, 2), (2, 2)], lhs_dilation=(2, 2),
        dimension_numbers=('NCHW', 'OIHW', 'NCHW'), precision=Pr)
    y = jnp.maximum(y + params['bt'].reshape(1, -1, 1, 1), 0.0)
    z = jnp.tanh(conv(y, params['wo'], 0))
    return y, (z if multi_scale else None)


if __name__ == "__main__":
    key = jax.random.PRNGKey(0)
    kx, ke, km, ks, kp = jax.random.split(key, 5)

    N, Cin, H, W, Cout = 2, 8, 16, 16, 8
    x = jax.random.normal(kx, (N, Cin, H, W), jnp.float32)
    enc_x = jax.random.normal(ke, (N, Cin, H, W), jnp.float32)
    mu_style = jax.random.normal(km, (N, Cin, 1, 1), jnp.float32)
    sigma_style = jnp.abs(jax.random.normal(ks, (N, Cin, 1, 1), jnp.float32)) + 0.5
    params = init_params(kp, Cin, Cout)

    y, z = decoder_block_forward(x, enc_x, True, mu_style, sigma_style, params)
    jax.block_until_ready((y, z))

    y_ref, z_ref = _ref_forward(x, enc_x, True, mu_style, sigma_style, params)
    np.testing.assert_allclose(np.asarray(y), np.asarray(y_ref), atol=5e-2, rtol=5e-2)
    np.testing.assert_allclose(np.asarray(z), np.asarray(z_ref), atol=5e-2, rtol=5e-2)

    print("KERNEL_OK")
</pallas_src>

<mosaic_0001>
module attributes {stable_mosaic.version = 11 : i64} {
  func.func @kernel(%arg0: i32, %arg1: memref<1x8x342xbf16, #tpu.memory_space<vmem>>, %arg2: memref<1x8x342xbf16, #tpu.memory_space<vmem>>, %arg3: memref<1x8x1xf32, #tpu.memory_space<vmem>>, %arg4: memref<1x8x1xf32, #tpu.memory_space<vmem>>, %arg5: memref<1x288xf32, #tpu.memory_space<vmem>>, %arg6: memref<8x72xbf16, #tpu.memory_space<vmem>>, %arg7: memref<8x72xbf16, #tpu.memory_space<vmem>>, %arg8: memref<4x8x144xbf16, #tpu.memory_space<vmem>>, %arg9: memref<8x1xf32, #tpu.memory_space<vmem>>, %arg10: memref<3x8xbf16, #tpu.memory_space<vmem>>, %arg11: memref<1x4x8x288xf32, #tpu.memory_space<vmem>>, %arg12: memref<1x4x3x288xf32, #tpu.memory_space<vmem>>) attributes {dimension_semantics = [#tpu.dimension_semantics<parallel>], iteration_bounds = array<i64: 2>, scalar_prefetch = 0 : i64, scratch_operands = 0 : i64, tpu.core_type = #tpu.core_type<tc>, window_params = [{transform_indices = @transform_0, window_bounds = array<i64: 1, 8, 342>}, {transform_indices = @transform_1, window_bounds = array<i64: 1, 8, 342>}, {transform_indices = @transform_2, window_bounds = array<i64: 1, 8, 1>}, {transform_indices = @transform_3, window_bounds = array<i64: 1, 8, 1>}, {pipeline_mode = #tpu.pipeline_mode<synchronous>, transform_indices = @transform_4, window_bounds = array<i64: 1, 288>}, {pipeline_mode = #tpu.pipeline_mode<synchronous>, transform_indices = @transform_5, window_bounds = array<i64: 8, 72>}, {pipeline_mode = #tpu.pipeline_mode<synchronous>, transform_indices = @transform_6, window_bounds = array<i64: 8, 72>}, {pipeline_mode = #tpu.pipeline_mode<synchronous>, transform_indices = @transform_7, window_bounds = array<i64: 4, 8, 144>}, {pipeline_mode = #tpu.pipeline_mode<synchronous>, transform_indices = @transform_8, window_bounds = array<i64: 8, 1>}, {pipeline_mode = #tpu.pipeline_mode<synchronous>, transform_indices = @transform_9, window_bounds = array<i64: 3, 8>}, {transform_indices = @transform_10, window_bounds = array<i64: 1, 4, 8, 288>}, {transform_indices = @transform_11, window_bounds = array<i64: 1, 4, 3, 288>}]} {
    %c0 = arith.constant 0 : index
    %c0_0 = arith.constant 0 : index
    %0 = vector.load %arg5[%c0, %c0_0] : memref<1x288xf32, #tpu.memory_space<vmem>>, vector<1x288xf32>
    %c0_1 = arith.constant 0 : index
    %c0_2 = arith.constant 0 : index
    %c0_3 = arith.constant 0 : index
    %1 = vector.load %arg3[%c0_1, %c0_2, %c0_3] : memref<1x8x1xf32, #tpu.memory_space<vmem>>, vector<1x8x1xf32>
    %2 = vector.shape_cast %1 : vector<1x8x1xf32> to vector<8x1xf32>
    %c0_4 = arith.constant 0 : index
    %c0_5 = arith.constant 0 : index
    %c0_6 = arith.constant 0 : index
    %3 = vector.load %arg4[%c0_4, %c0_5, %c0_6] : memref<1x8x1xf32, #tpu.memory_space<vmem>>, vector<1x8x1xf32>
    %4 = vector.shape_cast %3 : vector<1x8x1xf32> to vector<8x1xf32>
    %c0_7 = arith.constant 0 : index
    %c0_8 = arith.constant 0 : index
    %c0_9 = arith.constant 0 : index
    %5 = vector.load %arg1[%c0_7, %c0_8, %c0_9] : memref<1x8x342xbf16, #tpu.memory_space<vmem>>, vector<1x8x342xbf16>
    %6 = vector.shape_cast %5 : vector<1x8x342xbf16> to vector<8x342xbf16>
    %7 = vector.extract_strided_slice %6 {offsets = [0, 0], sizes = [8, 288], strides = [1, 1]} : vector<8x342xbf16> to vector<8x288xbf16>
    %8 = vector.extract_strided_slice %6 {offsets = [0, 1], sizes = [8, 288], strides = [1, 1]} : vector<8x342xbf16> to vector<8x288xbf16>
    %9 = vector.extract_strided_slice %6 {offsets = [0, 2], sizes = [8, 288], strides = [1, 1]} : vector<8x342xbf16> to vector<8x288xbf16>
    %10 = vector.extract_strided_slice %6 {offsets = [0, 18], sizes = [8, 288], strides = [1, 1]} : vector<8x342xbf16> to vector<8x288xbf16>
    %11 = vector.extract_strided_slice %6 {offsets = [0, 19], sizes = [8, 288], strides = [1, 1]} : vector<8x342xbf16> to vector<8x288xbf16>
    %12 = vector.extract_strided_slice %6 {offsets = [0, 20], sizes = [8, 288], strides = [1, 1]} : vector<8x342xbf16> to vector<8x288xbf16>
    %13 = vector.extract_strided_slice %6 {offsets = [0, 36], sizes = [8, 288], strides = [1, 1]} : vector<8x342xbf16> to vector<8x288xbf16>
    %14 = vector.extract_strided_slice %6 {offsets = [0, 37], sizes = [8, 288], strides = [1, 1]} : vector<8x342xbf16> to vector<8x288xbf16>
    %15 = vector.extract_strided_slice %6 {offsets = [0, 38], sizes = [8, 288], strides = [1, 1]} : vector<8x342xbf16> to vector<8x288xbf16>
    %16 = tpu.concatenate %7, %8, %9, %10, %11, %12, %13, %14, %15 in 0 : vector<8x288xbf16>, vector<8x288xbf16>, vector<8x288xbf16>, vector<8x288xbf16>, vector<8x288xbf16>, vector<8x288xbf16>, vector<8x288xbf16>, vector<8x288xbf16>, vector<8x288xbf16> -> vector<72x288xbf16>
    %c0_10 = arith.constant 0 : index
    %c0_11 = arith.constant 0 : index
    %17 = vector.load %arg6[%c0_10, %c0_11] : memref<8x72xbf16, #tpu.memory_space<vmem>>, vector<8x72xbf16>
    %cst = arith.constant dense<0.000000e+00> : vector<8x288xf32>
    %18 = tpu.matmul %17, %16, %cst {dimension_numbers = #tpu.dot_dimension_numbers<[1], [0], [0], [1], [0, 0, 1, 1], [], []>} : vector<8x72xbf16>, vector<72x288xbf16>, vector<8x288xf32> -> vector<8x288xf32>
    %19 = vector.broadcast %0 : vector<1x288xf32> to vector<8x288xf32>
    %20 = arith.mulf %18, %19 : vector<8x288xf32>
    %cst_12 = arith.constant dense<0.000000e+00> : vector<8xf32>
    %21 = vector.multi_reduction <add>, %20, %cst_12 [1] : vector<8x288xf32> to vector<8xf32>
    %22 = vector.shape_cast %21 : vector<8xf32> to vector<8x1xf32>
    %cst_13 = arith.constant 3.906250e-03 : f32
    %23 = vector.broadcast %cst_13 : f32 to vector<8x1xf32>
    %24 = arith.mulf %22, %23 : vector<8x1xf32>
    %25 = vector.broadcast %24 : vector<8x1xf32> to vector<8x288xf32>
    %26 = arith.subf %20, %25 : vector<8x288xf32>
    %27 = vector.broadcast %0 : vector<1x288xf32> to vector<8x288xf32>
    %28 = arith.mulf %26, %27 : vector<8x288xf32>
    %29 = arith.mulf %28, %28 : vector<8x288xf32>
    %cst_14 = arith.constant dense<0.000000e+00> : vector<8xf32>
    %30 = vector.multi_reduction <add>, %29, %cst_14 [1] : vector<8x288xf32> to vector<8xf32>
    %31 = vector.shape_cast %30 : vector<8xf32> to vector<8x1xf32>
    %cst_15 = arith.constant 0.00392156886 : f32
    %32 = vector.broadcast %cst_15 : f32 to vector<8x1xf32>
    %33 = arith.mulf %31, %32 : vector<8x1xf32>
    %34 = math.sqrt %33 : vector<8x1xf32>
    %cst_16 = arith.constant 9.99999974E-6 : f32
    %35 = vector.broadcast %cst_16 : f32 to vector<8x1xf32>
    %36 = arith.addf %34, %35 : vector<8x1xf32>
    %37 = tpu.reciprocal %36 {approx = true} : vector<8x1xf32> -> vector<8x1xf32>
    %38 = arith.mulf %4, %37 : vector<8x1xf32>
    %39 = arith.mulf %24, %38 : vector<8x1xf32>
    %40 = arith.subf %2, %39 : vector<8x1xf32>
    %41 = vector.broadcast %38 : vector<8x1xf32> to vector<8x288xf32>
    %42 = arith.mulf %20, %41 : vector<8x288xf32>
    %43 = vector.broadcast %40 : vector<8x1xf32> to vector<8x288xf32>
    %44 = arith.addf %42, %43 : vector<8x288xf32>
    %cst_17 = arith.constant 0.000000e+00 : f32
    %45 = vector.broadcast %cst_17 : f32 to vector<8x288xf32>
    %46 = arith.maximumf %44, %45 : vector<8x288xf32>
    %cst_18 = arith.constant 0.000000e+00 : bf16
    %47 = vector.broadcast %cst_18 : bf16 to vector<8x19xbf16>
    %48 = vector.broadcast %0 : vector<1x288xf32> to vector<8x288xf32>
    %49 = arith.mulf %46, %48 : vector<8x288xf32>
    %50 = arith.truncf %49 : vector<8x288xf32> to vector<8x288xbf16>
    %cst_19 = arith.constant 0.000000e+00 : bf16
    %51 = vector.broadcast %cst_19 : bf16 to vector<8x35xbf16>
    %52 = tpu.concatenate %47, %50, %51 in 1 : vector<8x19xbf16>, vector<8x288xbf16>, vector<8x35xbf16> -> vector<8x342xbf16>
    %53 = vector.extract_strided_slice %52 {offsets = [0, 0], sizes = [8, 288], strides = [1, 1]} : vector<8x342xbf16> to vector<8x288xbf16>
    %54 = vector.extract_strided_slice %52 {offsets = [0, 1], sizes = [8, 288], strides = [1, 1]} : vector<8x342xbf16> to vector<8x288xbf16>
    %55 = vector.extract_strided_slice %52 {offsets = [0, 2], sizes = [8, 288], strides = [1, 1]} : vector<8x342xbf16> to vector<8x288xbf16>
    %56 = vector.extract_strided_slice %52 {offsets = [0, 18], sizes = [8, 288], strides = [1, 1]} : vector<8x342xbf16> to vector<8x288xbf16>
    %57 = vector.extract_strided_slice %52 {offsets = [0, 19], sizes = [8, 288], strides = [1, 1]} : vector<8x342xbf16> to vector<8x288xbf16>
    %58 = vector.extract_strided_slice %52 {offsets = [0, 20], sizes = [8, 288], strides = [1, 1]} : vector<8x342xbf16> to vector<8x288xbf16>
    %59 = vector.extract_strided_slice %52 {offsets = [0, 36], sizes = [8, 288], strides = [1, 1]} : vector<8x342xbf16> to vector<8x288xbf16>
    %60 = vector.extract_strided_slice %52 {offsets = [0, 37], sizes = [8, 288], strides = [1, 1]} : vector<8x342xbf16> to vector<8x288xbf16>
    %61 = vector.extract_strided_slice %52 {offsets = [0, 38], sizes = [8, 288], strides = [1, 1]} : vector<8x342xbf16> to vector<8x288xbf16>
    %62 = tpu.concatenate %53, %54, %55, %56, %57, %58, %59, %60, %61 in 0 : vector<8x288xbf16>, vector<8x288xbf16>, vector<8x288xbf16>, vector<8x288xbf16>, vector<8x288xbf16>, vector<8x288xbf16>, vector<8x288xbf16>, vector<8x288xbf16>, vector<8x288xbf16> -> vector<72x288xbf16>
    %c0_20 = arith.constant 0 : index
    %c0_21 = arith.constant 0 : index
    %63 = vector.load %arg7[%c0_20, %c0_21] : memref<8x72xbf16, #tpu.memory_space<vmem>>, vector<8x72xbf16>
    %cst_22 = arith.constant dense<0.000000e+00> : vector<8x288xf32>
    %64 = tpu.matmul %63, %62, %cst_22 {dimension_numbers = #tpu.dot_dimension_numbers<[1], [0], [0], [1], [0, 0, 1, 1], [], []>} : vector<8x72xbf16>, vector<72x288xbf16>, vector<8x288xf32> -> vector<8x288xf32>
    %65 = vector.broadcast %0 : vector<1x288xf32> to vector<8x288xf32>
    %66 = arith.mulf %64, %65 : vector<8x288xf32>
    %cst_23 = arith.constant dense<0.000000e+00> : vector<8xf32>
    %67 = vector.multi_reduction <add>, %66, %cst_23 [1] : vector<8x288xf32> to vector<8xf32>
    %68 = vector.shape_cast %67 : vector<8xf32> to vector<8x1xf32>
    %cst_24 = arith.constant 3.906250e-03 : f32
    %69 = vector.broadcast %cst_24 : f32 to vector<8x1xf32>
    %70 = arith.mulf %68, %69 : vector<8x1xf32>
    %71 = vector.broadcast %70 : vector<8x1xf32> to vector<8x288xf32>
    %72 = arith.subf %66, %71 : vector<8x288xf32>
    %73 = vector.broadcast %0 : vector<1x288xf32> to vector<8x288xf32>
    %74 = arith.mulf %72, %73 : vector<8x288xf32>
    %75 = arith.mulf %74, %74 : vector<8x288xf32>
    %cst_25 = arith.constant dense<0.000000e+00> : vector<8xf32>
    %76 = vector.multi_reduction <add>, %75, %cst_25 [1] : vector<8x288xf32> to vector<8xf32>
    %77 = vector.shape_cast %76 : vector<8xf32> to vector<8x1xf32>
    %cst_26 = arith.constant 0.00392156886 : f32
    %78 = vector.broadcast %cst_26 : f32 to vector<8x1xf32>
    %79 = arith.mulf %77, %78 : vector<8x1xf32>
    %80 = math.sqrt %79 : vector<8x1xf32>
    %cst_27 = arith.constant 9.99999974E-6 : f32
    %81 = vector.broadcast %cst_27 : f32 to vector<8x1xf32>
    %82 = arith.addf %80, %81 : vector<8x1xf32>
    %83 = tpu.reciprocal %82 {approx = true} : vector<8x1xf32> -> vector<8x1xf32>
    %84 = arith.mulf %4, %83 : vector<8x1xf32>
    %85 = arith.mulf %70, %84 : vector<8x1xf32>
    %86 = arith.subf %2, %85 : vector<8x1xf32>
    %87 = vector.broadcast %84 : vector<8x1xf32> to vector<8x288xf32>
    %88 = arith.mulf %66, %87 : vector<8x288xf32>
    %89 = vector.broadcast %86 : vector<8x1xf32> to vector<8x288xf32>
    %90 = arith.addf %88, %89 : vector<8x288xf32>
    %cst_28 = arith.constant 0.000000e+00 : bf16
    %91 = vector.broadcast %cst_28 : bf16 to vector<8x19xbf16>
    %92 = vector.broadcast %0 : vector<1x288xf32> to vector<8x288xf32>
    %93 = arith.mulf %90, %92 : vector<8x288xf32>
    %94 = arith.truncf %93 : vector<8x288xf32> to vector<8x288xbf16>
    %cst_29 = arith.constant 0.000000e+00 : bf16
    %95 = vector.broadcast %cst_29 : bf16 to vector<8x35xbf16>
    %96 = tpu.concatenate %91, %94, %95 in 1 : vector<8x19xbf16>, vector<8x288xbf16>, vector<8x35xbf16> -> vector<8x342xbf16>
    %c0_30 = arith.constant 0 : index
    %c0_31 = arith.constant 0 : index
    %c0_32 = arith.constant 0 : index
    %97 = vector.load %arg2[%c0_30, %c0_31, %c0_32] : memref<1x8x342xbf16, #tpu.memory_space<vmem>>, vector<1x8x342xbf16>
    %98 = vector.shape_cast %97 : vector<1x8x342xbf16> to vector<8x342xbf16>
    %99 = vector.extract_strided_slice %98 {offsets = [0, 0], sizes = [8, 288], strides = [1, 1]} : vector<8x342xbf16> to vector<8x288xbf16>
    %100 = vector.extract_strided_slice %98 {offsets = [0, 1], sizes = [8, 288], strides = [1, 1]} : vector<8x342xbf16> to vector<8x288xbf16>
    %101 = vector.extract_strided_slice %98 {offsets = [0, 2], sizes = [8, 288], strides = [1, 1]} : vector<8x342xbf16> to vector<8x288xbf16>
    %102 = vector.extract_strided_slice %98 {offsets = [0, 18], sizes = [8, 288], strides = [1, 1]} : vector<8x342xbf16> to vector<8x288xbf16>
    %103 = vector.extract_strided_slice %98 {offsets = [0, 19], sizes = [8, 288], strides = [1, 1]} : vector<8x342xbf16> to vector<8x288xbf16>
    %104 = vector.extract_strided_slice %98 {offsets = [0, 20], sizes = [8, 288], strides = [1, 1]} : vector<8x342xbf16> to vector<8x288xbf16>
    %105 = vector.extract_strided_slice %98 {offsets = [0, 36], sizes = [8, 288], strides = [1, 1]} : vector<8x342xbf16> to vector<8x288xbf16>
    %106 = vector.extract_strided_slice %98 {offsets = [0, 37], sizes = [8, 288], strides = [1, 1]} : vector<8x342xbf16> to vector<8x288xbf16>
    %107 = vector.extract_strided_slice %98 {offsets = [0, 38], sizes = [8, 288], strides = [1, 1]} : vector<8x342xbf16> to vector<8x288xbf16>
    %108 = vector.extract_strided_slice %96 {offsets = [0, 0], sizes = [8, 288], strides = [1, 1]} : vector<8x342xbf16> to vector<8x288xbf16>
    %109 = vector.extract_strided_slice %96 {offsets = [0, 1], sizes = [8, 288], strides = [1, 1]} : vector<8x342xbf16> to vector<8x288xbf16>
    %110 = vector.extract_strided_slice %96 {offsets = [0, 2], sizes = [8, 288], strides = [1, 1]} : vector<8x342xbf16> to vector<8x288xbf16>
    %111 = vector.extract_strided_slice %96 {offsets = [0, 18], sizes = [8, 288], strides = [1, 1]} : vector<8x342xbf16> to vector<8x288xbf16>
    %112 = vector.extract_strided_slice %96 {offsets = [0, 19], sizes = [8, 288], strides = [1, 1]} : vector<8x342xbf16> to vector<8x288xbf16>
    %113 = vector.extract_strided_slice %96 {offsets = [0, 20], sizes = [8, 288], strides = [1, 1]} : vector<8x342xbf16> to vector<8x288xbf16>
    %114 = vector.extract_strided_slice %96 {offsets = [0, 36], sizes = [8, 288], strides = [1, 1]} : vector<8x342xbf16> to vector<8x288xbf16>
    %115 = vector.extract_strided_slice %96 {offsets = [0, 37], sizes = [8, 288], strides = [1, 1]} : vector<8x342xbf16> to vector<8x288xbf16>
    %116 = vector.extract_strided_slice %96 {offsets = [0, 38], sizes = [8, 288], strides = [1, 1]} : vector<8x342xbf16> to vector<8x288xbf16>
    %117 = tpu.concatenate %99, %100, %101, %102, %103, %104, %105, %106, %107, %108, %109, %110, %111, %112, %113, %114 in 0 : vector<8x288xbf16>, vector<8x288xbf16>, vector<8x288xbf16>, vector<8x288xbf16>, vector<8x288xbf16>, vector<8x288xbf16>, vector<8x288xbf16>, vector<8x288xbf16>, vector<8x288xbf16>, vector<8x288xbf16>, vector<8x288xbf16>, vector<8x288xbf16>, vector<8x288xbf16>, vector<8x288xbf16>, vector<8x288xbf16>, vector<8x288xbf16> -> vector<128x288xbf16>
    %118 = tpu.concatenate %115, %116 in 0 : vector<8x288xbf16>, vector<8x288xbf16> -> vector<16x288xbf16>
    %119 = tpu.concatenate %117, %118 in 0 : vector<128x288xbf16>, vector<16x288xbf16> -> vector<144x288xbf16>
    %c0_33 = arith.constant 0 : index
    %c0_34 = arith.constant 0 : index
    %120 = vector.load %arg9[%c0_33, %c0_34] : memref<8x1xf32, #tpu.memory_space<vmem>>, vector<8x1xf32>
    %121 = vector.shape_cast %120 : vector<8x1xf32> to vector<8x1xf32>
    %122 = vector.broadcast %121 : vector<8x1xf32> to vector<8x288xf32>
    %c0_35 = arith.constant 0 : index
    %c0_36 = arith.constant 0 : index
    %123 = vector.load %arg10[%c0_35, %c0_36] : memref<3x8xbf16, #tpu.memory_space<vmem>>, vector<3x8xbf16>
    %c0_37 = arith.constant 0 : index
    %c0_38 = arith.constant 0 : index
    %c0_39 = arith.constant 0 : index
    %124 = vector.load %arg8[%c0_37, %c0_38, %c0_39] : memref<4x8x144xbf16, #tpu.memory_space<vmem>>, vector<1x8x144xbf16>
    %125 = vector.shape_cast %124 : vector<1x8x144xbf16> to vector<8x144xbf16>
    %cst_40 = arith.constant dense<0.000000e+00> : vector<8x288xf32>
    %126 = tpu.matmul %125, %119, %cst_40 {dimension_numbers = #tpu.dot_dimension_numbers<[1], [0], [0], [1], [0, 0, 1, 1], [], []>} : vector<8x144xbf16>, vector<144x288xbf16>, vector<8x288xf32> -> vector<8x288xf32>
    %127 = arith.addf %126, %122 : vector<8x288xf32>
    %cst_41 = arith.constant 0.000000e+00 : f32
    %128 = vector.broadcast %cst_41 : f32 to vector<8x288xf32>
    %129 = arith.maximumf %127, %128 : vector<8x288xf32>
    %c0_42 = arith.constant 0 : index
    %c0_43 = arith.constant 0 : index
    %c0_44 = arith.constant 0 : index
    %c0_45 = arith.constant 0 : index
    %130 = vector.load %arg11[%c0_42, %c0_43, %c0_44, %c0_45] : memref<1x4x8x288xf32, #tpu.memory_space<vmem>>, vector<1x1x8x288xf32>
    %131 = vector.shape_cast %130 : vector<1x1x8x288xf32> to vector<8x288xf32>
    %132 = vector.shape_cast %129 : vector<8x288xf32> to vector<1x1x8x288xf32>
    tpu.vector_store %arg11[%c0_42, %c0_43, %c0_44, %c0_45], %132 {strides = array<i32>} : memref<1x4x8x288xf32, #tpu.memory_space<vmem>>, vector<1x1x8x288xf32>,
    %133 = arith.truncf %129 : vector<8x288xf32> to vector<8x288xbf16>
    %cst_46 = arith.constant dense<0.000000e+00> : vector<3x288xf32>
    %134 = tpu.matmul %123, %133, %cst_46 {dimension_numbers = #tpu.dot_dimension_numbers<[1], [0], [0], [1], [0, 0, 1, 1], [], []>} : vector<3x8xbf16>, vector<8x288xbf16>, vector<3x288xf32> -> vector<3x288xf32>
    %135 = math.tanh %134 : vector<3x288xf32>
    %c0_47 = arith.constant 0 : index
    %c0_48 = arith.constant 0 : index
    %c0_49 = arith.constant 0 : index
    %c0_50 = arith.constant 0 : index
    %136 = vector.load %arg12[%c0_47, %c0_48, %c0_49, %c0_50] : memref<1x4x3x288xf32, #tpu.memory_space<vmem>>, vector<1x1x3x288xf32>
    %137 = vector.shape_cast %136 : vector<1x1x3x288xf32> to vector<3x288xf32>
    %138 = vector.shape_cast %135 : vector<3x288xf32> to vector<1x1x3x288xf32>
    tpu.vector_store %arg12[%c0_47, %c0_48, %c0_49, %c0_50], %138 {strides = array<i32>} : memref<1x4x3x288xf32, #tpu.memory_space<vmem>>, vector<1x1x3x288xf32>,
    %c1 = arith.constant 1 : index
    %c0_51 = arith.constant 0 : index
    %c0_52 = arith.constant 0 : index
    %139 = vector.load %arg8[%c1, %c0_51, %c0_52] : memref<4x8x144xbf16, #tpu.memory_space<vmem>>, vector<1x8x144xbf16>
    %140 = vector.shape_cast %139 : vector<1x8x144xbf16> to vector<8x144xbf16>
    %cst_53 = arith.constant dense<0.000000e+00> : vector<8x288xf32>
    %141 = tpu.matmul %140, %119, %cst_53 {dimension_numbers = #tpu.dot_dimension_numbers<[1], [0], [0], [1], [0, 0, 1, 1], [], []>} : vector<8x144xbf16>, vector<144x288xbf16>, vector<8x288xf32> -> vector<8x288xf32>
    %142 = arith.addf %141, %122 : vector<8x288xf32>
    %cst_54 = arith.constant 0.000000e+00 : f32
    %143 = vector.broadcast %cst_54 : f32 to vector<8x288xf32>
    %144 = arith.maximumf %142, %143 : vector<8x288xf32>
    %c0_55 = arith.constant 0 : index
    %c1_56 = arith.constant 1 : index
    %c0_57 = arith.constant 0 : index
    %c0_58 = arith.constant 0 : index
    %145 = vector.load %arg11[%c0_55, %c1_56, %c0_57, %c0_58] : memref<1x4x8x288xf32, #tpu.memory_space<vmem>>, vector<1x1x8x288xf32>
    %146 = vector.shape_cast %145 : vector<1x1x8x288xf32> to vector<8x288xf32>
    %147 = vector.shape_cast %144 : vector<8x288xf32> to vector<1x1x8x288xf32>
    tpu.vector_store %arg11[%c0_55, %c1_56, %c0_57, %c0_58], %147 {strides = array<i32>} : memref<1x4x8x288xf32, #tpu.memory_space<vmem>>, vector<1x1x8x288xf32>,
    %148 = arith.truncf %144 : vector<8x288xf32> to vector<8x288xbf16>
    %cst_59 = arith.constant dense<0.000000e+00> : vector<3x288xf32>
    %149 = tpu.matmul %123, %148, %cst_59 {dimension_numbers = #tpu.dot_dimension_numbers<[1], [0], [0], [1], [0, 0, 1, 1], [], []>} : vector<3x8xbf16>, vector<8x288xbf16>, vector<3x288xf32> -> vector<3x288xf32>
    %150 = math.tanh %149 : vector<3x288xf32>
    %c0_60 = arith.constant 0 : index
    %c1_61 = arith.constant 1 : index
    %c0_62 = arith.constant 0 : index
    %c0_63 = arith.constant 0 : index
    %151 = vector.load %arg12[%c0_60, %c1_61, %c0_62, %c0_63] : memref<1x4x3x288xf32, #tpu.memory_space<vmem>>, vector<1x1x3x288xf32>
    %152 = vector.shape_cast %151 : vector<1x1x3x288xf32> to vector<3x288xf32>
    %153 = vector.shape_cast %150 : vector<3x288xf32> to vector<1x1x3x288xf32>
    tpu.vector_store %arg12[%c0_60, %c1_61, %c0_62, %c0_63], %153 {strides = array<i32>} : memref<1x4x3x288xf32, #tpu.memory_space<vmem>>, vector<1x1x3x288xf32>,
    %c2 = arith.constant 2 : index
    %c0_64 = arith.constant 0 : index
    %c0_65 = arith.constant 0 : index
    %154 = vector.load %arg8[%c2, %c0_64, %c0_65] : memref<4x8x144xbf16, #tpu.memory_space<vmem>>, vector<1x8x144xbf16>
    %155 = vector.shape_cast %154 : vector<1x8x144xbf16> to vector<8x144xbf16>
    %cst_66 = arith.constant dense<0.000000e+00> : vector<8x288xf32>
    %156 = tpu.matmul %155, %119, %cst_66 {dimension_numbers = #tpu.dot_dimension_numbers<[1], [0], [0], [1], [0, 0, 1, 1], [], []>} : vector<8x144xbf16>, vector<144x288xbf16>, vector<8x288xf32> -> vector<8x288xf32>
    %157 = arith.addf %156, %122 : vector<8x288xf32>
    %cst_67 = arith.constant 0.000000e+00 : f32
    %158 = vector.broadcast %cst_67 : f32 to vector<8x288xf32>
    %159 = arith.maximumf %157, %158 : vector<8x288xf32>
    %c0_68 = arith.constant 0 : index
    %c2_69 = arith.constant 2 : index
    %c0_70 = arith.constant 0 : index
    %c0_71 = arith.constant 0 : index
    %160 = vector.load %arg11[%c0_68, %c2_69, %c0_70, %c0_71] : memref<1x4x8x288xf32, #tpu.memory_space<vmem>>, vector<1x1x8x288xf32>
    %161 = vector.shape_cast %160 : vector<1x1x8x288xf32> to vector<8x288xf32>
    %162 = vector.shape_cast %159 : vector<8x288xf32> to vector<1x1x8x288xf32>
    tpu.vector_store %arg11[%c0_68, %c2_69, %c0_70, %c0_71], %162 {strides = array<i32>} : memref<1x4x8x288xf32, #tpu.memory_space<vmem>>, vector<1x1x8x288xf32>,
    %163 = arith.truncf %159 : vector<8x288xf32> to vector<8x288xbf16>
    %cst_72 = arith.constant dense<0.000000e+00> : vector<3x288xf32>
    %164 = tpu.matmul %123, %163, %cst_72 {dimension_numbers = #tpu.dot_dimension_numbers<[1], [0], [0], [1], [0, 0, 1, 1], [], []>} : vector<3x8xbf16>, vector<8x288xbf16>, vector<3x288xf32> -> vector<3x288xf32>
    %165 = math.tanh %164 : vector<3x288xf32>
    %c0_73 = arith.constant 0 : index
    %c2_74 = arith.constant 2 : index
    %c0_75 = arith.constant 0 : index
    %c0_76 = arith.constant 0 : index
    %166 = vector.load %arg12[%c0_73, %c2_74, %c0_75, %c0_76] : memref<1x4x3x288xf32, #tpu.memory_space<vmem>>, vector<1x1x3x288xf32>
    %167 = vector.shape_cast %166 : vector<1x1x3x288xf32> to vector<3x288xf32>
    %168 = vector.shape_cast %165 : vector<3x288xf32> to vector<1x1x3x288xf32>
    tpu.vector_store %arg12[%c0_73, %c2_74, %c0_75, %c0_76], %168 {strides = array<i32>} : memref<1x4x3x288xf32, #tpu.memory_space<vmem>>, vector<1x1x3x288xf32>,
    %c3 = arith.constant 3 : index
    %c0_77 = arith.constant 0 : index
    %c0_78 = arith.constant 0 : index
    %169 = vector.load %arg8[%c3, %c0_77, %c0_78] : memref<4x8x144xbf16, #tpu.memory_space<vmem>>, vector<1x8x144xbf16>
    %170 = vector.shape_cast %169 : vector<1x8x144xbf16> to vector<8x144xbf16>
    %cst_79 = arith.constant dense<0.000000e+00> : vector<8x288xf32>
    %171 = tpu.matmul %170, %119, %cst_79 {dimension_numbers = #tpu.dot_dimension_numbers<[1], [0], [0], [1], [0, 0, 1, 1], [], []>} : vector<8x144xbf16>, vector<144x288xbf16>, vector<8x288xf32> -> vector<8x288xf32>
    %172 = arith.addf %171, %122 : vector<8x288xf32>
    %cst_80 = arith.constant 0.000000e+00 : f32
    %173 = vector.broadcast %cst_80 : f32 to vector<8x288xf32>
    %174 = arith.maximumf %172, %173 : vector<8x288xf32>
    %c0_81 = arith.constant 0 : index
    %c3_82 = arith.constant 3 : index
    %c0_83 = arith.constant 0 : index
    %c0_84 = arith.constant 0 : index
    %175 = vector.load %arg11[%c0_81, %c3_82, %c0_83, %c0_84] : memref<1x4x8x288xf32, #tpu.memory_space<vmem>>, vector<1x1x8x288xf32>
    %176 = vector.shape_cast %175 : vector<1x1x8x288xf32> to vector<8x288xf32>
    %177 = vector.shape_cast %174 : vector<8x288xf32> to vector<1x1x8x288xf32>
    tpu.vector_store %arg11[%c0_81, %c3_82, %c0_83, %c0_84], %177 {strides = array<i32>} : memref<1x4x8x288xf32, #tpu.memory_space<vmem>>, vector<1x1x8x288xf32>,
    %178 = arith.truncf %174 : vector<8x288xf32> to vector<8x288xbf16>
    %cst_85 = arith.constant dense<0.000000e+00> : vector<3x288xf32>
    %179 = tpu.matmul %123, %178, %cst_85 {dimension_numbers = #tpu.dot_dimension_numbers<[1], [0], [0], [1], [0, 0, 1, 1], [], []>} : vector<3x8xbf16>, vector<8x288xbf16>, vector<3x288xf32> -> vector<3x288xf32>
    %180 = math.tanh %179 : vector<3x288xf32>
    %c0_86 = arith.constant 0 : index
    %c3_87 = arith.constant 3 : index
    %c0_88 = arith.constant 0 : index
    %c0_89 = arith.constant 0 : index
    %181 = vector.load %arg12[%c0_86, %c3_87, %c0_88, %c0_89] : memref<1x4x3x288xf32, #tpu.memory_space<vmem>>, vector<1x1x3x288xf32>
    %182 = vector.shape_cast %181 : vector<1x1x3x288xf32> to vector<3x288xf32>
    %183 = vector.shape_cast %180 : vector<3x288xf32> to vector<1x1x3x288xf32>
    tpu.vector_store %arg12[%c0_86, %c3_87, %c0_88, %c0_89], %183 {strides = array<i32>} : memref<1x4x3x288xf32, #tpu.memory_space<vmem>>, vector<1x1x3x288xf32>,
    return
  }
  func.func @transform_0(%arg0: i32) -> (i32, i32, i32) {
    %c0_i32 = arith.constant 0 : i32
    %c0_i32_0 = arith.constant 0 : i32
    %c0_i32_1 = arith.constant 0 : i32
    return %arg0, %c0_i32, %c0_i32_0 : i32, i32, i32
  }
  func.func @transform_1(%arg0: i32) -> (i32, i32, i32) {
    %c0_i32 = arith.constant 0 : i32
    %c0_i32_0 = arith.constant 0 : i32
    %c0_i32_1 = arith.constant 0 : i32
    return %arg0, %c0_i32, %c0_i32_0 : i32, i32, i32
  }
  func.func @transform_2(%arg0: i32) -> (i32, i32, i32) {
    %c0_i32 = arith.constant 0 : i32
    %c0_i32_0 = arith.constant 0 : i32
    %c0_i32_1 = arith.constant 0 : i32
    return %arg0, %c0_i32, %c0_i32_0 : i32, i32, i32
  }
  func.func @transform_3(%arg0: i32) -> (i32, i32, i32) {
    %c0_i32 = arith.constant 0 : i32
    %c0_i32_0 = arith.constant 0 : i32
    %c0_i32_1 = arith.constant 0 : i32
    return %arg0, %c0_i32, %c0_i32_0 : i32, i32, i32
  }
  func.func @transform_4(%arg0: i32) -> (i32, i32) {
    %c0_i32 = arith.constant 0 : i32
    %c0_i32_0 = arith.constant 0 : i32
    %c0_i32_1 = arith.constant 0 : i32
    return %c0_i32, %c0_i32_0 : i32, i32
  }
  func.func @transform_5(%arg0: i32) -> (i32, i32) {
    %c0_i32 = arith.constant 0 : i32
    %c0_i32_0 = arith.constant 0 : i32
    %c0_i32_1 = arith.constant 0 : i32
    return %c0_i32, %c0_i32_0 : i32, i32
  }
  func.func @transform_6(%arg0: i32) -> (i32, i32) {
    %c0_i32 = arith.constant 0 : i32
    %c0_i32_0 = arith.constant 0 : i32
    %c0_i32_1 = arith.constant 0 : i32
    return %c0_i32, %c0_i32_0 : i32, i32
  }
  func.func @transform_7(%arg0: i32) -> (i32, i32, i32) {
    %c0_i32 = arith.constant 0 : i32
    %c0_i32_0 = arith.constant 0 : i32
    %c0_i32_1 = arith.constant 0 : i32
    %c0_i32_2 = arith.constant 0 : i32
    return %c0_i32, %c0_i32_0, %c0_i32_1 : i32, i32, i32
  }
  func.func @transform_8(%arg0: i32) -> (i32, i32) {
    %c0_i32 = arith.constant 0 : i32
    %c0_i32_0 = arith.constant 0 : i32
    %c0_i32_1 = arith.constant 0 : i32
    return %c0_i32, %c0_i32_0 : i32, i32
  }
  func.func @transform_9(%arg0: i32) -> (i32, i32) {
    %c0_i32 = arith.constant 0 : i32
    %c0_i32_0 = arith.constant 0 : i32
    %c0_i32_1 = arith.constant 0 : i32
    return %c0_i32, %c0_i32_0 : i32, i32
  }
  func.func @transform_10(%arg0: i32) -> (i32, i32, i32, i32) {
    %c0_i32 = arith.constant 0 : i32
    %c0_i32_0 = arith.constant 0 : i32
    %c0_i32_1 = arith.constant 0 : i32
    %c0_i32_2 = arith.constant 0 : i32
    return %arg0, %c0_i32, %c0_i32_0, %c0_i32_1 : i32, i32, i32, i32
  }
  func.func @transform_11(%arg0: i32) -> (i32, i32, i32, i32) {
    %c0_i32 = arith.constant 0 : i32
    %c0_i32_0 = arith.constant 0 : i32
    %c0_i32_1 = arith.constant 0 : i32
    %c0_i32_2 = arith.constant 0 : i32
    return %arg0, %c0_i32, %c0_i32_0, %c0_i32_1 : i32, i32, i32, i32
  }
}

</mosaic_0001>

<llo_original>
// kernel: tpu_custom_call.1
$region0: #{tpu_custom_call.1}
  #allocation0 [shape = 'u32[]', space=smem, size = 0x4, offset = 0x4, fixed_abs, tag = 'smem constant byte address 0x4 - core index']
  #allocation1 [shape = 'u32[144,128]{1,0:T(1,128)}', space=vmem, size = 0x12000, scoped, tag = 'internal scratch']
  %s0 = inlined_call_operand.vmem [shape: bf16[2,8,342], index: 0, kind: input, shape index: {}]
  %s1 = inlined_call_operand.hbm [shape: bf16[2,8,342], index: 1, kind: input, shape index: {}]
  %s2 = inlined_call_operand.vmem [shape: f32[2,8,1], index: 2, kind: input, shape index: {}]
  %s3 = inlined_call_operand.vmem [shape: f32[2,8,1], index: 3, kind: input, shape index: {}]
  %s4 = inlined_call_operand.vmem [shape: f32[1,288], index: 4, kind: input, shape index: {}]
  %s5 = inlined_call_operand.vmem [shape: bf16[8,72], index: 5, kind: input, shape index: {}]
  %s6 = inlined_call_operand.vmem [shape: bf16[8,72], index: 6, kind: input, shape index: {}]
  %s7 = inlined_call_operand.vmem [shape: bf16[4,8,144], index: 7, kind: input, shape index: {}]
  %s8 = inlined_call_operand.vmem [shape: f32[8,1], index: 8, kind: input, shape index: {}]
  %s9 = inlined_call_operand.vmem [shape: bf16[3,8], index: 9, kind: input, shape index: {}]
  %s10 = inlined_call_operand.hbm [shape: f32[2,4,8,288], index: 10, kind: output, shape index: {0}]
  %s11 = inlined_call_operand.vmem [shape: f32[2,4,3,288], index: 11, kind: output, shape index: {1}]
  %12 = xla_tuple %s10, %s11
  %s13 = sld [smem:[#allocation0]]
  $region85: #{tpu_custom_call.1} parent=0
    _
  %s15 = ssub.s32 1, %s13
  %s16 = scalar_select 0, %s15, %s13
  $region1: #{tpu_custom_call.1} parent=0
    #allocation2 [shape = 'u8[12288]{0}', space=vmem, size = 0x3000, scoped, tag = 'input window, operand 1']
    #allocation3 [shape = 's32[2]{0}', space=sflag, size = 0x8, scoped, tag = 'scoped memory for tpu_custom_call.1']
    #allocation4 [shape = 's32[2]{0}', space=sflag, size = 0x8, scoped, tag = 'scoped memory for tpu_custom_call.1']
    #allocation5 [shape = 'u8[98304]{0}', space=vmem, size = 0x18000, scoped, tag = 'output window, operand 0']
    %17 = vsyncpa [#allocation3], 0
    %s18 = scalar_lea.sflag [#allocation3], 1
    %19 = vsyncpa %s18, 0
    %20 = vsyncpa [#allocation4], 0
    %s21 = scalar_lea.sflag [#allocation4], 1
    %22 = vsyncpa %s21, 0
    loop: start=0, step=1, limit=4
    $region2: #{tpu_custom_call.1} parent=1 // loop_pre_header
      _
    $region3: #{tpu_custom_call.1} parent=1 // loop_header
      %s24 = sphi 0, %s28
      %p25 = scmp.ge.s32.totalorder %s24, 4
      %s34 = sphi 0, %s36
      %s37 = sphi 0, %s34
      %s38 = sphi 0, %s37
      %s54 = sphi 0, %s38
      %s60 = sphi 0, %s62
      %s63 = sphi 0, %s60
      %s64 = sphi 0, %s63
      %s80 = sphi 0, %s64
      %s86 = sphi 0, %s88
      %s89 = sphi 0, %s86
      %s90 = sphi 0, %s89
      %s106 = sphi 0, %s90
      %s112 = sphi 0, %s114
      %s115 = sphi 0, %s112
      %s116 = sphi 0, %s115
      %s132 = sphi 0, %s116
      %s136 = sphi 0, %s136
      %s138 = sphi 0, %s136
      %s139 = sphi 0, %s138
      %s153 = sphi 0, %s139
      %s157 = sphi 0, %s157
      %s159 = sphi 0, %s157
      %s160 = sphi 0, %s159
      %s174 = sphi 0, %s160
      %s178 = sphi 0, %s178
      %s180 = sphi 0, %s178
      %s181 = sphi 0, %s180
      %s195 = sphi 0, %s181
      %s199 = sphi 0, %s199
      %s201 = sphi 0, %s199
      %s202 = sphi 0, %s201
      %s216 = sphi 0, %s202
      %s220 = sphi 0, %s220
      %s222 = sphi 0, %s220
      %s223 = sphi 0, %s222
      %s237 = sphi 0, %s223
      %s241 = sphi 0, %s241
      %s243 = sphi 0, %s241
      %s244 = sphi 0, %s243
      %s258 = sphi 0, %s244
      %s264 = sphi 0, %s266
      %s267 = sphi 0, %s264
      %s268 = sphi 0, %s267
      %s284 = sphi 0, %s268
      %s290 = sphi 0, %s292
      %s293 = sphi 0, %s290
      %s294 = sphi 0, %s293
      %s310 = sphi 0, %s294
    $region4: #{tpu_custom_call.1} parent=1 // loop_header_branch
      %27 = sbr.rel (%p25) target = $region8
    $region5: #{tpu_custom_call.1} parent=1 // loop_body
      %s29 = ssub.s32 %s24, 1
      %s30 = ssub.s32 %s24, 2
      %s31 = sadd.s32 %s24, 1
      %s32 = ssub.s32 %s24, %s31
      %p33 = scmp.eq.s32.totalorder %s32, 0
      %s35 = sadd.s32 %s34, 1
      %s36 = scalar_select %p33, %s34, %s35
      %p39 = pneg %p33
      %p40 = scmp.eq.s32.totalorder %s24, 1
      %p41 = por %p39, %p40
      %p42 = scmp.ne.s32.totalorder %s34, %s37
      %p43 = scmp.eq.s32.totalorder %s24, 0
      %p44 = por %p42, %p43
      %p45 = scmp.ne.s32.totalorder %s34, %s37
      %p46 = scmp.eq.s32.totalorder %s29, 1
      %p47 = por %p45, %p46
      %p48 = scmp.ne.s32.totalorder %s37, %s38
      %p49 = scmp.eq.s32.totalorder %s29, 0
      %p50 = por %p48, %p49
      %p51 = scmp.ne.s32.totalorder %s37, %s38
      %p52 = scmp.eq.s32.totalorder %s30, 1
      %p53 = por %p51, %p52
      %p55 = scmp.ne.s32.totalorder %s38, %s54
      %p56 = scmp.eq.s32.totalorder %s30, 0
      %p57 = por %p55, %p56
      %s58 = ssub.s32 %s24, %s31
      %p59 = scmp.eq.s32.totalorder %s58, 0
      %s61 = sadd.s32 %s60, 1
      %s62 = scalar_select %p59, %s60, %s61
      %p65 = pneg %p59
      %p66 = scmp.eq.s32.totalorder %s24, 1
      %p67 = por %p65, %p66
      %p68 = scmp.ne.s32.totalorder %s60, %s63
      %p69 = scmp.eq.s32.totalorder %s24, 0
      %p70 = por %p68, %p69
      %p71 = scmp.ne.s32.totalorder %s60, %s63
      %p72 = scmp.eq.s32.totalorder %s29, 1
      %p73 = por %p71, %p72
      %p74 = scmp.ne.s32.totalorder %s63, %s64
      %p75 = scmp.eq.s32.totalorder %s29, 0
      %p76 = por %p74, %p75
      %p77 = scmp.ne.s32.totalorder %s63, %s64
      %p78 = scmp.eq.s32.totalorder %s30, 1
      %p79 = por %p77, %p78
      %p81 = scmp.ne.s32.totalorder %s64, %s80
      %p82 = scmp.eq.s32.totalorder %s30, 0
      %p83 = por %p81, %p82
      %s84 = ssub.s32 %s24, %s31
      %p85 = scmp.eq.s32.totalorder %s84, 0
      %s87 = sadd.s32 %s86, 1
      %s88 = scalar_select %p85, %s86, %s87
      %p91 = pneg %p85
      %p92 = scmp.eq.s32.totalorder %s24, 1
      %p93 = por %p91, %p92
      %p94 = scmp.ne.s32.totalorder %s86, %s89
      %p95 = scmp.eq.s32.totalorder %s24, 0
      %p96 = por %p94, %p95
      %p97 = scmp.ne.s32.totalorder %s86, %s89
      %p98 = scmp.eq.s32.totalorder %s29, 1
      %p99 = por %p97, %p98
      %p100 = scmp.ne.s32.totalorder %s89, %s90
      %p101 = scmp.eq.s32.totalorder %s29, 0
      %p102 = por %p100, %p101
      %p103 = scmp.ne.s32.totalorder %s89, %s90
      %p104 = scmp.eq.s32.totalorder %s30, 1
      %p105 = por %p103, %p104
      %p107 = scmp.ne.s32.totalorder %s90, %s106
      %p108 = scmp.eq.s32.totalorder %s30, 0
      %p109 = por %p107, %p108
      %s110 = ssub.s32 %s24, %s31
      %p111 = scmp.eq.s32.totalorder %s110, 0
      %s113 = sadd.s32 %s112, 1
      %s114 = scalar_select %p111, %s112, %s113
      %p117 = pneg %p111
      %p118 = scmp.eq.s32.totalorder %s24, 1
      %p119 = por %p117, %p118
      %p120 = scmp.ne.s32.totalorder %s112, %s115
      %p121 = scmp.eq.s32.totalorder %s24, 0
      %p122 = por %p120, %p121
      %p123 = scmp.ne.s32.totalorder %s112, %s115
      %p124 = scmp.eq.s32.totalorder %s29, 1
      %p125 = por %p123, %p124
      %p126 = scmp.ne.s32.totalorder %s115, %s116
      %p127 = scmp.eq.s32.totalorder %s29, 0
      %p128 = por %p126, %p127
      %p129 = scmp.ne.s32.totalorder %s115, %s116
      %p130 = scmp.eq.s32.totalorder %s30, 1
      %p131 = por %p129, %p130
      %p133 = scmp.ne.s32.totalorder %s116, %s132
      %p134 = scmp.eq.s32.totalorder %s30, 0
      %p135 = por %p133, %p134
      %s137 = sadd.s32 %s136, 1
      %p140 = scmp.eq.s32.totalorder %s24, 1
      %p141 = scmp.ne.s32.totalorder %s136, %s138
      %p142 = scmp.eq.s32.totalorder %s24, 0
      %p143 = por %p141, %p142
      %p144 = scmp.ne.s32.totalorder %s136, %s138
      %p145 = scmp.eq.s32.totalorder %s29, 1
      %p146 = por %p144, %p145
      %p147 = scmp.ne.s32.totalorder %s138, %s139
      %p148 = scmp.eq.s32.totalorder %s29, 0
      %p149 = por %p147, %p148
      %p150 = scmp.ne.s32.totalorder %s138, %s139
      %p151 = scmp.eq.s32.totalorder %s30, 1
      %p152 = por %p150, %p151
      %p154 = scmp.ne.s32.totalorder %s139, %s153
      %p155 = scmp.eq.s32.totalorder %s30, 0
      %p156 = por %p154, %p155
      %s158 = sadd.s32 %s157, 1
      %p161 = scmp.eq.s32.totalorder %s24, 1
      %p162 = scmp.ne.s32.totalorder %s157, %s159
      %p163 = scmp.eq.s32.totalorder %s24, 0
      %p164 = por %p162, %p163
      %p165 = scmp.ne.s32.totalorder %s157, %s159
      %p166 = scmp.eq.s32.totalorder %s29, 1
      %p167 = por %p165, %p166
      %p168 = scmp.ne.s32.totalorder %s159, %s160
      %p169 = scmp.eq.s32.totalorder %s29, 0
      %p170 = por %p168, %p169
      %p171 = scmp.ne.s32.totalorder %s159, %s160
      %p172 = scmp.eq.s32.totalorder %s30, 1
      %p173 = por %p171, %p172
      %p175 = scmp.ne.s32.totalorder %s160, %s174
      %p176 = scmp.eq.s32.totalorder %s30, 0
      %p177 = por %p175, %p176
      %s179 = sadd.s32 %s178, 1
      %p182 = scmp.eq.s32.totalorder %s24, 1
      %p183 = scmp.ne.s32.totalorder %s178, %s180
      %p184 = scmp.eq.s32.totalorder %s24, 0
      %p185 = por %p183, %p184
      %p186 = scmp.ne.s32.totalorder %s178, %s180
      %p187 = scmp.eq.s32.totalorder %s29, 1
      %p188 = por %p186, %p187
      %p189 = scmp.ne.s32.totalorder %s180, %s181
      %p190 = scmp.eq.s32.totalorder %s29, 0
      %p191 = por %p189, %p190
      %p192 = scmp.ne.s32.totalorder %s180, %s181
      %p193 = scmp.eq.s32.totalorder %s30, 1
      %p194 = por %p192, %p193
      %p196 = scmp.ne.s32.totalorder %s181, %s195
      %p197 = scmp.eq.s32.totalorder %s30, 0
      %p198 = por %p196, %p197
      %s200 = sadd.s32 %s199, 1
      %p203 = scmp.eq.s32.totalorder %s24, 1
      %p204 = scmp.ne.s32.totalorder %s199, %s201
      %p205 = scmp.eq.s32.totalorder %s24, 0
      %p206 = por %p204, %p205
      %p207 = scmp.ne.s32.totalorder %s199, %s201
      %p208 = scmp.eq.s32.totalorder %s29, 1
      %p209 = por %p207, %p208
      %p210 = scmp.ne.s32.totalorder %s201, %s202
      %p211 = scmp.eq.s32.totalorder %s29, 0
      %p212 = por %p210, %p211
      %p213 = scmp.ne.s32.totalorder %s201, %s202
      %p214 = scmp.eq.s32.totalorder %s30, 1
      %p215 = por %p213, %p214
      %p217 = scmp.ne.s32.totalorder %s202, %s216
      %p218 = scmp.eq.s32.totalorder %s30, 0
      %p219 = por %p217, %p218
      %s221 = sadd.s32 %s220, 1
      %p224 = scmp.eq.s32.totalorder %s24, 1
      %p225 = scmp.ne.s32.totalorder %s220, %s222
      %p226 = scmp.eq.s32.totalorder %s24, 0
      %p227 = por %p225, %p226
      %p228 = scmp.ne.s32.totalorder %s220, %s222
      %p229 = scmp.eq.s32.totalorder %s29, 1
      %p230 = por %p228, %p229
      %p231 = scmp.ne.s32.totalorder %s222, %s223
      %p232 = scmp.eq.s32.totalorder %s29, 0
      %p233 = por %p231, %p232
      %p234 = scmp.ne.s32.totalorder %s222, %s223
      %p235 = scmp.eq.s32.totalorder %s30, 1
      %p236 = por %p234, %p235
      %p238 = scmp.ne.s32.totalorder %s223, %s237
      %p239 = scmp.eq.s32.totalorder %s30, 0
      %p240 = por %p238, %p239
      %s242 = sadd.s32 %s241, 1
      %p245 = scmp.eq.s32.totalorder %s24, 1
      %p246 = scmp.ne.s32.totalorder %s241, %s243
      %p247 = scmp.eq.s32.totalorder %s24, 0
      %p248 = por %p246, %p247
      %p249 = scmp.ne.s32.totalorder %s241, %s243
      %p250 = scmp.eq.s32.totalorder %s29, 1
      %p251 = por %p249, %p250
      %p252 = scmp.ne.s32.totalorder %s243, %s244
      %p253 = scmp.eq.s32.totalorder %s29, 0
      %p254 = por %p252, %p253
      %p255 = scmp.ne.s32.totalorder %s243, %s244
      %p256 = scmp.eq.s32.totalorder %s30, 1
      %p257 = por %p255, %p256
      %p259 = scmp.ne.s32.totalorder %s244, %s258
      %p260 = scmp.eq.s32.totalorder %s30, 0
      %p261 = por %p259, %p260
      %s262 = ssub.s32 %s24, %s31
      %p263 = scmp.eq.s32.totalorder %s262, 0
      %s265 = sadd.s32 %s264, 1
      %s266 = scalar_select %p263, %s264, %s265
      %p269 = pneg %p263
      %p270 = scmp.eq.s32.totalorder %s24, 1
      %p271 = por %p269, %p270
      %p272 = scmp.ne.s32.totalorder %s264, %s267
      %p273 = scmp.eq.s32.totalorder %s24, 0
      %p274 = por %p272, %p273
      %p275 = scmp.ne.s32.totalorder %s264, %s267
      %p276 = scmp.eq.s32.totalorder %s29, 1
      %p277 = por %p275, %p276
      %p278 = scmp.ne.s32.totalorder %s267, %s268
      %p279 = scmp.eq.s32.totalorder %s29, 0
      %p280 = por %p278, %p279
      %p281 = scmp.ne.s32.totalorder %s267, %s268
      %p282 = scmp.eq.s32.totalorder %s30, 1
      %p283 = por %p281, %p282
      %p285 = scmp.ne.s32.totalorder %s268, %s284
      %p286 = scmp.eq.s32.totalorder %s30, 0
      %p287 = por %p285, %p286
      %s288 = ssub.s32 %s24, %s31
      %p289 = scmp.eq.s32.totalorder %s288, 0
      %s291 = sadd.s32 %s290, 1
      %s292 = scalar_select %p289, %s290, %s291
      %p295 = pneg %p289
      %p296 = scmp.eq.s32.totalorder %s24, 1
      %p297 = por %p295, %p296
      %p298 = scmp.ne.s32.totalorder %s290, %s293
      %p299 = scmp.eq.s32.totalorder %s24, 0
      %p300 = por %p298, %p299
      %p301 = scmp.ne.s32.totalorder %s290, %s293
      %p302 = scmp.eq.s32.totalorder %s29, 1
      %p303 = por %p301, %p302
      %p304 = scmp.ne.s32.totalorder %s293, %s294
      %p305 = scmp.eq.s32.totalorder %s29, 0
      %p306 = por %p304, %p305
      %p307 = scmp.ne.s32.totalorder %s293, %s294
      %p308 = scmp.eq.s32.totalorder %s30, 1
      %p309 = por %p307, %p308
      %p311 = scmp.ne.s32.totalorder %s294, %s310
      %p312 = scmp.eq.s32.totalorder %s30, 0
      %p313 = por %p311, %p312
      %p314 = scmp.le.s32.totalorder 1, %s24
      %p315 = scmp.lt.s32.totalorder %s24, 3
      %p316 = pnand %p314, %p315
      %p317 = pneg %p316
      // Predicated region
      $region9: #{tpu_custom_call.1} parent=5 // pred_check
        _
      $region10: #{tpu_custom_call.1} parent=5 // pred_check_branch
        %319 = sbr.rel (%p316) target = $region12
      $region11: #{tpu_custom_call.1} parent=5 // pred_region
        %s320 = ssub.s32 %s24, 1
        // Predicated region
        $region13: #{tpu_custom_call.1} parent=11 // pred_check
          %p321 = pneg %p149
        $region14: #{tpu_custom_call.1} parent=11 // pred_check_branch
          %323 = sbr.rel (%p321) target = $region16
        $region15: #{tpu_custom_call.1} parent=11 // pred_region
          _
        $region16: #{tpu_custom_call.1} parent=11 // pred_fallthru
          _
        // Predicated region
        $region17: #{tpu_custom_call.1} parent=11 // pred_check
          %p324 = pneg %p170
        $region18: #{tpu_custom_call.1} parent=11 // pred_check_branch
          %326 = sbr.rel (%p324) target = $region20
        $region19: #{tpu_custom_call.1} parent=11 // pred_region
          _
        $region20: #{tpu_custom_call.1} parent=11 // pred_fallthru
          _
        // Predicated region
        $region21: #{tpu_custom_call.1} parent=11 // pred_check
          %p327 = pneg %p191
        $region22: #{tpu_custom_call.1} parent=11 // pred_check_branch
          %329 = sbr.rel (%p327) target = $region24
        $region23: #{tpu_custom_call.1} parent=11 // pred_region
          _
        $region24: #{tpu_custom_call.1} parent=11 // pred_fallthru
          _
        // Predicated region
        $region25: #{tpu_custom_call.1} parent=11 // pred_check
          %p330 = pneg %p212
        $region26: #{tpu_custom_call.1} parent=11 // pred_check_branch
          %332 = sbr.rel (%p330) target = $region28
        $region27: #{tpu_custom_call.1} parent=11 // pred_region
          _
        $region28: #{tpu_custom_call.1} parent=11 // pred_fallthru
          _
        // Predicated region
        $region29: #{tpu_custom_call.1} parent=11 // pred_check
          %p333 = pneg %p233
        $region30: #{tpu_custom_call.1} parent=11 // pred_check_branch
          %335 = sbr.rel (%p333) target = $region32
        $region31: #{tpu_custom_call.1} parent=11 // pred_region
          _
        $region32: #{tpu_custom_call.1} parent=11 // pred_fallthru
          _
        // Predicated region
        $region33: #{tpu_custom_call.1} parent=11 // pred_check
          %p336 = pneg %p254
        $region34: #{tpu_custom_call.1} parent=11 // pred_check_branch
          %338 = sbr.rel (%p336) target = $region36
        $region35: #{tpu_custom_call.1} parent=11 // pred_region
          _
        $region36: #{tpu_custom_call.1} parent=11 // pred_fallthru
          _
      $region12: #{tpu_custom_call.1} parent=5 // pred_fallthru
        _
      %p339 = scmp.lt.s32.totalorder %s24, 2
      // Predicated region
      $region37: #{tpu_custom_call.1} parent=5 // pred_check
        %p340 = pneg %p339
      $region38: #{tpu_custom_call.1} parent=5 // pred_check_branch
        %342 = sbr.rel (%p340) target = $region40
      $region39: #{tpu_custom_call.1} parent=5 // pred_region
        // Predicated region
        $region41: #{tpu_custom_call.1} parent=39 // pred_check
          %p343 = pneg %p44
        $region42: #{tpu_custom_call.1} parent=39 // pred_check_branch
          %345 = sbr.rel (%p343) target = $region44
        $region43: #{tpu_custom_call.1} parent=39 // pred_region
          %p346 = scmp.lt.s32.totalorder %s24, 1
          %s347 = scalar_select %p346, %s24, 1
          %s348 = smul.addr %s347, 3
          %s349 = smul.addr %s348, 4
          %s350 = scalar_lea.vmem %s0, %s349
        $region44: #{tpu_custom_call.1} parent=39 // pred_fallthru
          _
        // Predicated region
        $region45: #{tpu_custom_call.1} parent=39 // pred_check
          %p351 = pneg %p70
        $region46: #{tpu_custom_call.1} parent=39 // pred_check_branch
          %353 = sbr.rel (%p351) target = $region48
        $region47: #{tpu_custom_call.1} parent=39 // pred_region
          %s354 = sand.u32 %s60, 1
          %s355 = scalar_lea.sflag [#allocation3], %s354
          %s356 = sand.u32 %s60, 1
          %s357 = smul.addr %s356, 12
          %s358 = scalar_lea.vmem [#allocation2], %s357
          %s360 = ssub.s32 192, 192
          %361 = vsyncadd %s355, %s360
          %s362 = smul.addr %s24, 3
          %s363 = smul.addr %s362, 64
          %s364 = scalar_lea.hbm %s1, %s363
          %s366 = sshll.u32 %s358, 4
          %s367 = int_to_ptr.vmem [resolvable:$true] %s366
          %369 = dma.hbm_to_vmem [thread:$0]  %s364, 192, %s367, %s355
        $region48: #{tpu_custom_call.1} parent=39 // pred_fallthru
          _
        // Predicated region
        $region49: #{tpu_custom_call.1} parent=39 // pred_check
          %p370 = pneg %p96
        $region50: #{tpu_custom_call.1} parent=39 // pred_check_branch
          %372 = sbr.rel (%p370) target = $region52
        $region51: #{tpu_custom_call.1} parent=39 // pred_region
          %p373 = scmp.lt.s32.totalorder %s24, 1
          %s374 = scalar_select %p373, %s24, 1
          %s375 = smul.addr %s374, 8
          %s376 = scalar_lea.vmem %s2, %s375
        $region52: #{tpu_custom_call.1} parent=39 // pred_fallthru
          _
        // Predicated region
        $region53: #{tpu_custom_call.1} parent=39 // pred_check
          %p377 = pneg %p122
        $region54: #{tpu_custom_call.1} parent=39 // pred_check_branch
          %379 = sbr.rel (%p377) target = $region56
        $region55: #{tpu_custom_call.1} parent=39 // pred_region
          %p380 = scmp.lt.s32.totalorder %s24, 1
          %s381 = scalar_select %p380, %s24, 1
          %s382 = smul.addr %s381, 8
          %s383 = scalar_lea.vmem %s3, %s382
        $region56: #{tpu_custom_call.1} parent=39 // pred_fallthru
          _
      $region40: #{tpu_custom_call.1} parent=5 // pred_fallthru
        _
      %p384 = scmp.le.s32.totalorder 1, %s24
      %p385 = scmp.lt.s32.totalorder %s24, 3
      %p386 = pnand %p384, %p385
      %p387 = pneg %p386
      // Predicated region
      $region57: #{tpu_custom_call.1} parent=5 // pred_check
        _
      $region58: #{tpu_custom_call.1} parent=5 // pred_check_branch
        %389 = sbr.rel (%p386) target = $region60
      $region59: #{tpu_custom_call.1} parent=5 // pred_region
        %s390 = ssub.s32 %s24, 1
        %s391 = sand.u32 %s63, 1
        %s392 = scalar_lea.sflag [#allocation3], %s391
        %s393 = sand.u32 %s63, 1
        %s394 = smul.addr %s393, 12
        %s395 = scalar_lea.vmem [#allocation2], %s394
        // Predicated region
        $region61: #{tpu_custom_call.1} parent=59 // pred_check
          %p396 = pneg %p76
        $region62: #{tpu_custom_call.1} parent=59 // pred_check_branch
          %398 = sbr.rel (%p396) target = $region64
        $region63: #{tpu_custom_call.1} parent=59 // pred_region
          %399 = dma.done %s392, 192
        $region64: #{tpu_custom_call.1} parent=59 // pred_fallthru
          _
        %p400 = scmp.lt.s32.totalorder %s29, 1
        %s401 = scalar_select %p400, %s29, 1
        %s402 = smul.addr %s401, 3
        %s403 = smul.addr %s402, 4
        %s404 = scalar_lea.vmem %s0, %s403
        %p405 = pneg %p50
        %p406 = pneg %p47
        %s407 = sand.u32 %s63, 1
        %s408 = scalar_lea.sflag [#allocation3], %s407
        %s409 = sand.u32 %s63, 1
        %s410 = smul.addr %s409, 12
        %s411 = scalar_lea.vmem [#allocation2], %s410
        %p412 = pneg %p76
        %p413 = pneg %p73
        %p414 = scmp.lt.s32.totalorder %s29, 1
        %s415 = scalar_select %p414, %s29, 1
        %s416 = smul.addr %s415, 8
        %s417 = scalar_lea.vmem %s2, %s416
        %p418 = pneg %p102
        %p419 = pneg %p99
        %p420 = scmp.lt.s32.totalorder %s29, 1
        %s421 = scalar_select %p420, %s29, 1
        %s422 = smul.addr %s421, 8
        %s423 = scalar_lea.vmem %s3, %s422
        %p424 = pneg %p128
        %p425 = pneg %p125
        %p426 = pneg %p149
        %p427 = pneg %p146
        %p428 = pneg %p170
        %p429 = pneg %p167
        %p430 = pneg %p191
        %p431 = pneg %p188
        %p432 = pneg %p212
        %p433 = pneg %p209
        %p434 = pneg %p233
        %p435 = pneg %p230
        %p436 = pneg %p254
        %p437 = pneg %p251
        %p438 = pneg %p280
        %p439 = pneg %p277
        %s440 = sand.u32 %s267, 1
        %s441 = scalar_lea.sflag [#allocation4], %s440
        %s442 = sand.u32 %s267, 1
        %s443 = smul.addr %s442, 96
        %s444 = scalar_lea.vmem [#allocation5], %s443
        %p445 = pneg %p306
        %p446 = pneg %p303
        %p447 = scmp.lt.s32.totalorder %s29, 1
        %s448 = scalar_select %p447, %s29, 1
        %s449 = smul.addr %s448, 12
        %s450 = smul.addr %s449, 4
        %s451 = scalar_lea.vmem %s11, %s450
        %p452 = scmp.lt.s32.totalorder %s29, 1
        %s453 = scalar_select %p452, %s29, 1
        %s454 = smul.addr %s453, 3
        %s455 = smul.addr %s454, 4
        %s456 = scalar_lea.vmem %s0, %s455
        %p457 = scmp.lt.s32.totalorder %s29, 1
        %s458 = scalar_select %p457, %s29, 1
        %s459 = smul.addr %s458, 8
        %s460 = scalar_lea.vmem %s2, %s459
        %p461 = scmp.lt.s32.totalorder %s29, 1
        %s462 = scalar_select %p461, %s29, 1
        %s463 = smul.addr %s462, 8
        %s464 = scalar_lea.vmem %s3, %s463
        %p465 = scmp.lt.s32.totalorder %s29, 1
        %s466 = scalar_select %p465, %s29, 1
        %s467 = smul.addr %s466, 12
        %s468 = smul.addr %s467, 4
        %s469 = scalar_lea.vmem %s11, %s468
        %v471 = vld [vmem:[%s4] sm:$0x7]
        %v472 = vld [vmem:[%s460] sm:$0xff]
        %v473 = vld [vmem:[%s464] sm:$0xff]
        %v474 = vld [vmem:[%s456] sm:$0xff]
        %v475 = vld [vmem:[%s456 + $0x8] sm:$0xf]
        %v478 = vunpack.c.l.b16 %v474
        %v479 = vunpack.c.h.b16 %v474
        %v480 = vunpack.c.l.b16 %v475
        %v481 = vpack.c.b16 %v478, %v478
        %v482 = vpack.c.b16 %v479, %v479
        %v483 = vpack.c.b16 %v480, %v480
        %484 = vrot.lane.b32.xlu0 %v481, 127
        %v485 = vpop.permute.xlu0 %484
        %486 = vrot.lane.b32.xlu0 %v482, 127
        %v487 = vpop.permute.xlu0 %486
        %488 = vrot.lane.b32.xlu0 %v483, 127
        %v489 = vpop.permute.xlu0 %488
        %vm490 = vcmask 1039360
        %v491 = vsel %vm490, %v485, %v487
        %v492 = vsel %vm490, %v487, %v489
        %493 = vrot.lane.b32.xlu0 %v481, 126
        %v494 = vpop.permute.xlu0 %493
        %495 = vrot.lane.b32.xlu0 %v482, 126
        %v496 = vpop.permute.xlu0 %495
        %497 = vrot.lane.b32.xlu0 %v483, 126
        %v498 = vpop.permute.xlu0 %497
        %vm499 = vcmask 1031168
        %v500 = vsel %vm499, %v494, %v496
        %v501 = vsel %vm499, %v496, %v498
        %502 = vrot.lane.b32.xlu0 %v481, 110
        %v503 = vpop.permute.xlu0 %502
        %504 = vrot.lane.b32.xlu0 %v482, 110
        %v505 = vpop.permute.xlu0 %504
        %506 = vrot.lane.b32.xlu0 %v483, 110
        %v507 = vpop.permute.xlu0 %506
        %vm508 = vcmask 900096
        %v509 = vsel %vm508, %v503, %v505
        %v510 = vsel %vm508, %v505, %v507
        %511 = vrot.lane.b32.xlu0 %v481, 109
        %v512 = vpop.permute.xlu0 %511
        %513 = vrot.lane.b32.xlu0 %v482, 109
        %v514 = vpop.permute.xlu0 %513
        %515 = vrot.lane.b32.xlu0 %v483, 109
        %v516 = vpop.permute.xlu0 %515
        %vm517 = vcmask 891904
        %v518 = vsel %vm517, %v512, %v514
        %v519 = vsel %vm517, %v514, %v516
        %520 = vrot.lane.b32.xlu0 %v481, 108
        %v521 = vpop.permute.xlu0 %520
        %522 = vrot.lane.b32.xlu0 %v482, 108
        %v523 = vpop.permute.xlu0 %522
        %524 = vrot.lane.b32.xlu0 %v483, 108
        %v525 = vpop.permute.xlu0 %524
        %vm526 = vcmask 883712
        %v527 = vsel %vm526, %v521, %v523
        %v528 = vsel %vm526, %v523, %v525
        %529 = vrot.lane.b32.xlu0 %v481, 92
        %v530 = vpop.permute.xlu0 %529
        %531 = vrot.lane.b32.xlu0 %v482, 92
        %v532 = vpop.permute.xlu0 %531
        %533 = vrot.lane.b32.xlu0 %v483, 92
        %v534 = vpop.permute.xlu0 %533
        %vm535 = vcmask 752640
        %v536 = vsel %vm535, %v530, %v532
        %v537 = vsel %vm535, %v532, %v534
        %538 = vrot.lane.b32.xlu0 %v481, 91
        %v539 = vpop.permute.xlu0 %538
        %540 = vrot.lane.b32.xlu0 %v482, 91
        %v541 = vpop.permute.xlu0 %540
        %542 = vrot.lane.b32.xlu0 %v483, 91
        %v543 = vpop.permute.xlu0 %542
        %vm544 = vcmask 744448
        %v545 = vsel %vm544, %v539, %v541
        %v546 = vsel %vm544, %v541, %v543
        %547 = vrot.lane.b32.xlu0 %v481, 90
        %v548 = vpop.permute.xlu0 %547
        %549 = vrot.lane.b32.xlu0 %v482, 90
        %v550 = vpop.permute.xlu0 %549
        %551 = vrot.lane.b32.xlu0 %v483, 90
        %v552 = vpop.permute.xlu0 %551
        %vm553 = vcmask 736256
        %v554 = vsel %vm553, %v548, %v550
        %v555 = vsel %vm553, %v550, %v552
        %vm556 = vcmask 1043456
        %v559 = vsel %vm556, %v481, %v491
        %v563 = vsel %vm556, %v482, %v492
        %v567 = vsel %vm556, %v483, %v489
        %v571 = vsel %vm556, %v500, %v509
        %v575 = vsel %vm556, %v501, %v510
        %v579 = vsel %vm556, %v498, %v507
        %v583 = vsel %vm556, %v518, %v527
        %v587 = vsel %vm556, %v519, %v528
        %v591 = vsel %vm556, %v516, %v525
        %v595 = vsel %vm556, %v536, %v545
        %v599 = vsel %vm556, %v537, %v546
        %v603 = vsel %vm556, %v534, %v543
        %v605 = vld [vmem:[%s5] sm:$0xf]
        %vm606 = vcmask 588800
        %v608 = vsel %vm606, %v605, 0
        %v611 = vsel %vm556, %v554, 0
        %v614 = vsel %vm556, %v555, 0
        %v617 = vsel %vm556, %v552, 0
        %619 = vmatprep.subr.bf16.mxu0 %v563
        %620 = vmatpush1.bf16.msra.mxu0 %v559
        %621 = vmatprep.subr.bf16.mxu0 %v575
        %622 = vmatpush1.bf16.msra.mxu0 %v571
        %623 = vmatprep.subr.bf16.mxu0 %v587
        %624 = vmatpush1.bf16.msra.mxu0 %v583
        %625 = vmatprep.subr.bf16.mxu0 %v599
        %626 = vmatpush1.bf16.msra.mxu0 %v595
        %627 = vmatprep.subr.bf16.mxu0 %v614
        %628 = vmatpush1.bf16.msra.mxu0 %v611
        %629 = vmatprep.subr.bf16.mxu0 0
        %630 = vmatpush1.bf16.msra.mxu0 0
        %631 = vmatprep.subr.bf16.mxu0 0
        %632 = vmatpush1.bf16.msra.mxu0 0
        %633 = vmatprep.subr.bf16.mxu0 0
        %634 = vmatpush1.bf16.msra.mxu0 0
        %635 = vmatprep.subr.bf16.mxu0 0
        %636 = vmatpush1.bf16.msra.mxu0 0
        %637 = vmatprep.subr.bf16.mxu0 0
        %638 = vmatpush1.bf16.msra.mxu0 0
        %639 = vmatprep.subr.bf16.mxu0 0
        %640 = vmatpush1.bf16.msra.mxu0 0
        %641 = vmatprep.subr.bf16.mxu0 0
        %642 = vmatpush1.bf16.msra.mxu0 0
        %643 = vmatprep.subr.bf16.mxu0 0
        %644 = vmatpush1.bf16.msra.mxu0 0
        %645 = vmatprep.subr.bf16.mxu0 0
        %646 = vmatpush1.bf16.msra.mxu0 0
        %647 = vmatprep.subr.bf16.mxu0 0
        %648 = vmatpush1.bf16.msra.mxu0 0
        %649 = vmatprep.subr.bf16.mxu0 0
        %650 = vmatpush1.bf16.msra.mxu0 0
        %651 = vmatprep.mubr.bf16.mxu0 0
        %652 = vmatmul.mubr.bf16.gmra.mrb[0].mxu0 %v608
        %v653 = vpop.f32.mrb[0].mxu0
        %v654 = vadd.f32 0.0, %v653
        %v655 = vpop.f32.mrb[0].mxu0
        %v656 = vadd.f32 0.0, %v655
        %v657 = vpop.f32.mrb[0].mxu0
        %v658 = vpop.f32.mrb[0].mxu0
        %659 = vdwg.mxu0
        %660 = vmatprep.subr.bf16.mxu0 0
        %661 = vmatpush1.bf16.msra.mxu0 %v567
        %662 = vmatprep.subr.bf16.mxu0 0
        %663 = vmatpush1.bf16.msra.mxu0 %v579
        %664 = vmatprep.subr.bf16.mxu0 0
        %665 = vmatpush1.bf16.msra.mxu0 %v591
        %666 = vmatprep.subr.bf16.mxu0 0
        %667 = vmatpush1.bf16.msra.mxu0 %v603
        %668 = vmatprep.subr.bf16.mxu0 0
        %669 = vmatpush1.bf16.msra.mxu0 %v617
        %670 = vmatprep.subr.bf16.mxu0 0
        %671 = vmatpush1.bf16.msra.mxu0 0
        %672 = vmatprep.subr.bf16.mxu0 0
        %673 = vmatpush1.bf16.msra.mxu0 0
        %674 = vmatprep.subr.bf16.mxu0 0
        %675 = vmatpush1.bf16.msra.mxu0 0
        %676 = vmatprep.subr.bf16.mxu0 0
        %677 = vmatpush1.bf16.msra.mxu0 0
        %678 = vmatprep.subr.bf16.mxu0 0
        %679 = vmatpush1.bf16.msra.mxu0 0
        %680 = vmatprep.subr.bf16.mxu0 0
        %681 = vmatpush1.bf16.msra.mxu0 0
        %682 = vmatprep.subr.bf16.mxu0 0
        %683 = vmatpush1.bf16.msra.mxu0 0
        %684 = vmatprep.subr.bf16.mxu0 0
        %685 = vmatpush1.bf16.msra.mxu0 0
        %686 = vmatprep.subr.bf16.mxu0 0
        %687 = vmatpush1.bf16.msra.mxu0 0
        %688 = vmatprep.subr.bf16.mxu0 0
        %689 = vmatpush1.bf16.msra.mxu0 0
        %690 = vmatprep.subr.bf16.mxu0 0
        %691 = vmatpush1.bf16.msra.mxu0 0
        %692 = vmatprep.mubr.bf16.mxu0 0
        %693 = vmatmul.mubr.bf16.gmra.mrb[0].mxu0 %v608
        %v694 = vpop.f32.mrb[0].mxu0
        %v695 = vadd.f32 0.0, %v694
        %v696 = vpop.f32.mrb[0].mxu0
        %v697 = vpop.f32.mrb[0].mxu0
        %v698 = vpop.f32.mrb[0].mxu0
        %699 = vdwg.mxu0
        %v701 = vlaneseq
        %v702 = vshrl.u32 %v701, 7
        %v703 = vsub.s32 0, %v702
        %v704 = vrot.slane %v471, %v703
        %v705 = vlaneseq
        %v706 = vshrl.u32 %v705, 7
        %v707 = vsub.s32 1, %v706
        %v708 = vrot.slane %v471, %v707
        %v709 = vlaneseq
        %v710 = vshrl.u32 %v709, 7
        %v711 = vsub.s32 2, %v710
        %v712 = vrot.slane %v471, %v711
        %v716 = vmul.f32 %v654, %v704
        %v717 = vmul.f32 %v656, %v708
        %v718 = vmul.f32 %v695, %v712
        %v719 = vadd.f32 %v716, %v717
        %vm720 = vcmask 261120
        %v721 = vsel %vm720, %v718, 0.0
        %v722 = vadd.f32 %v719, %v721
        %723 = vadd.xlane.f32.xlu0 %v722
        %v724 = vpop.xlane.xlu0 %723
        %v725 = vmul.f32 %v724, 0.00390625
        %v726 = vsub.f32 %v716, %v725
        %v727 = vsub.f32 %v717, %v725
        %v728 = vsub.f32 %v718, %v725
        %v729 = vmul.f32 %v726, %v704
        %v730 = vmul.f32 %v727, %v708
        %v731 = vmul.f32 %v728, %v712
        %v732 = vmul.f32 %v729, %v729
        %v733 = vmul.f32 %v730, %v730
        %v734 = vmul.f32 %v731, %v731
        %v735 = vadd.f32 %v732, %v733
        %v736 = vsel %vm720, %v734, 0.0
        %v737 = vadd.f32 %v735, %v736
        %738 = vadd.xlane.f32.xlu0 %v737
        %v739 = vpop.xlane.xlu0 %738
        %v740 = vmul.f32 %v739, 0.003921569
        %v741 = vrsqrt.pop %v740
        %v742 = vmul.f32 %v740, %v741
        %vm743 = vcmp.eq.f32.partialorder %v740, inf
        %v744 = vsel %vm743, %v740, %v742
        %vm745 = vcmp.eq.f32.partialorder %v740, 0.0
        %v746 = vand.u32 %v740, 2147483648
        %v747 = vsel %vm745, %v746, %v744
        %v748 = vadd.f32 %v747, 1e-05
        %v749 = vrcp.pop %v748
        %v750 = vmul.f32 %v473, %v749
        %v751 = vmul.f32 %v725, %v750
        %v752 = vsub.f32 %v472, %v751
        %754 = vset.pattern.permute.xlu0 0
        %755 = vperm.xlu0 %754, %v750
        %v756 = vpop.permute.xlu0 %755
        %v758 = vmul.f32 %v716, %v756
        %v759 = vmul.f32 %v717, %v756
        %v760 = vmul.f32 %v718, %v756
        %762 = vset.pattern.permute.xlu0 0
        %763 = vperm.xlu0 %762, %v752
        %v764 = vpop.permute.xlu0 %763
        %v766 = vadd.f32 %v758, %v764
        %v767 = vadd.f32 %v759, %v764
        %v768 = vadd.f32 %v760, %v764
        %v769 = vmax.f32 %v766, 0.0
        %v770 = vmax.f32 %v767, 0.0
        %v771 = vmax.f32 %v768, 0.0
        %v772 = vmul.f32 %v769, %v704
        %v773 = vmul.f32 %v770, %v708
        %v774 = vmul.f32 %v771, %v712
        %v775 = vpack.c.bf16 %v772, %v772
        %v776 = vpack.c.bf16 %v773, %v773
        %v777 = vpack.c.bf16 %v774, %v774
        %781 = vrot.lane.b32.xlu0 %v775, 19
        %v782 = vpop.permute.xlu0 %781
        %783 = vrot.lane.b32.xlu0 %v776, 19
        %v784 = vpop.permute.xlu0 %783
        %785 = vrot.lane.b32.xlu0 %v777, 19
        %v786 = vpop.permute.xlu0 %785
        %vm787 = vcmask 154624
        %v788 = vsel %vm787, %v782, %v784
        %v789 = vsel %vm787, %v784, %v786
        %vm790 = vcmask 154624
        %v793 = vsel %vm790, 0, %v782
        %vm794 = vcmask 416768
        %v796 = vsel %vm794, %v789, 0
        %v799 = vrot.slane %v793, 4
        %v800 = vrot.slane %v788, 4
        %v801 = vrot.slane %v796, 4
        %802 = vrot.lane.b32.xlu0 %v799, 127
        %v803 = vpop.permute.xlu0 %802
        %804 = vrot.lane.b32.xlu0 %v800, 127
        %v805 = vpop.permute.xlu0 %804
        %806 = vrot.lane.b32.xlu0 %v801, 127
        %v807 = vpop.permute.xlu0 %806
        %v808 = vsel %vm490, %v803, %v805
        %v809 = vsel %vm490, %v805, %v807
        %810 = vrot.lane.b32.xlu0 %v793, 126
        %v811 = vpop.permute.xlu0 %810
        %812 = vrot.lane.b32.xlu0 %v788, 126
        %v813 = vpop.permute.xlu0 %812
        %814 = vrot.lane.b32.xlu0 %v796, 126
        %v815 = vpop.permute.xlu0 %814
        %v816 = vsel %vm499, %v811, %v813
        %v817 = vsel %vm499, %v813, %v815
        %818 = vrot.lane.b32.xlu0 %v799, 110
        %v819 = vpop.permute.xlu0 %818
        %820 = vrot.lane.b32.xlu0 %v800, 110
        %v821 = vpop.permute.xlu0 %820
        %822 = vrot.lane.b32.xlu0 %v801, 110
        %v823 = vpop.permute.xlu0 %822
        %v824 = vsel %vm508, %v819, %v821
        %v825 = vsel %vm508, %v821, %v823
        %826 = vrot.lane.b32.xlu0 %v793, 109
        %v827 = vpop.permute.xlu0 %826
        %828 = vrot.lane.b32.xlu0 %v788, 109
        %v829 = vpop.permute.xlu0 %828
        %830 = vrot.lane.b32.xlu0 %v796, 109
        %v831 = vpop.permute.xlu0 %830
        %v832 = vsel %vm517, %v827, %v829
        %v833 = vsel %vm517, %v829, %v831
        %834 = vrot.lane.b32.xlu0 %v799, 108
        %v835 = vpop.permute.xlu0 %834
        %836 = vrot.lane.b32.xlu0 %v800, 108
        %v837 = vpop.permute.xlu0 %836
        %838 = vrot.lane.b32.xlu0 %v801, 108
        %v839 = vpop.permute.xlu0 %838
        %v840 = vsel %vm526, %v835, %v837
        %v841 = vsel %vm526, %v837, %v839
        %842 = vrot.lane.b32.xlu0 %v793, 92
        %v843 = vpop.permute.xlu0 %842
        %844 = vrot.lane.b32.xlu0 %v788, 92
        %v845 = vpop.permute.xlu0 %844
        %846 = vrot.lane.b32.xlu0 %v796, 92
        %v847 = vpop.permute.xlu0 %846
        %v848 = vsel %vm535, %v843, %v845
        %v849 = vsel %vm535, %v845, %v847
        %850 = vrot.lane.b32.xlu0 %v799, 91
        %v851 = vpop.permute.xlu0 %850
        %852 = vrot.lane.b32.xlu0 %v800, 91
        %v853 = vpop.permute.xlu0 %852
        %854 = vrot.lane.b32.xlu0 %v801, 91
        %v855 = vpop.permute.xlu0 %854
        %v856 = vsel %vm544, %v851, %v853
        %v857 = vsel %vm544, %v853, %v855
        %858 = vrot.lane.b32.xlu0 %v793, 90
        %v859 = vpop.permute.xlu0 %858
        %860 = vrot.lane.b32.xlu0 %v788, 90
        %v861 = vpop.permute.xlu0 %860
        %862 = vrot.lane.b32.xlu0 %v796, 90
        %v863 = vpop.permute.xlu0 %862
        %v864 = vsel %vm553, %v859, %v861
        %v865 = vsel %vm553, %v861, %v863
        %v867 = vsel %vm556, %v793, %v808
        %v871 = vsel %vm556, %v788, %v809
        %v874 = vsel %vm556, %v796, %v807
        %v878 = vsel %vm556, %v816, %v824
        %v882 = vsel %vm556, %v817, %v825
        %v886 = vsel %vm556, %v815, %v823
        %v890 = vsel %vm556, %v832, %v840
        %v894 = vsel %vm556, %v833, %v841
        %v898 = vsel %vm556, %v831, %v839
        %v902 = vsel %vm556, %v848, %v856
        %v906 = vsel %vm556, %v849, %v857
        %v910 = vsel %vm556, %v847, %v855
        %v912 = vld [vmem:[%s6] sm:$0xf]
        %v914 = vsel %vm606, %v912, 0
        %v917 = vsel %vm556, %v864, 0
        %v920 = vsel %vm556, %v865, 0
        %v923 = vsel %vm556, %v863, 0
        %925 = vmatprep.subr.bf16.mxu0 %v871
        %926 = vmatpush1.bf16.msra.mxu0 %v867
        %927 = vmatprep.subr.bf16.mxu0 %v882
        %928 = vmatpush1.bf16.msra.mxu0 %v878
        %929 = vmatprep.subr.bf16.mxu0 %v894
        %930 = vmatpush1.bf16.msra.mxu0 %v890
        %931 = vmatprep.subr.bf16.mxu0 %v906
        %932 = vmatpush1.bf16.msra.mxu0 %v902
        %933 = vmatprep.subr.bf16.mxu0 %v920
        %934 = vmatpush1.bf16.msra.mxu0 %v917
        %935 = vmatprep.subr.bf16.mxu0 0
        %936 = vmatpush1.bf16.msra.mxu0 0
        %937 = vmatprep.subr.bf16.mxu0 0
        %938 = vmatpush1.bf16.msra.mxu0 0
        %939 = vmatprep.subr.bf16.mxu0 0
        %940 = vmatpush1.bf16.msra.mxu0 0
        %941 = vmatprep.subr.bf16.mxu0 0
        %942 = vmatpush1.bf16.msra.mxu0 0
        %943 = vmatprep.subr.bf16.mxu0 0
        %944 = vmatpush1.bf16.msra.mxu0 0
        %945 = vmatprep.subr.bf16.mxu0 0
        %946 = vmatpush1.bf16.msra.mxu0 0
        %947 = vmatprep.subr.bf16.mxu0 0
        %948 = vmatpush1.bf16.msra.mxu0 0
        %949 = vmatprep.subr.bf16.mxu0 0
        %950 = vmatpush1.bf16.msra.mxu0 0
        %951 = vmatprep.subr.bf16.mxu0 0
        %952 = vmatpush1.bf16.msra.mxu0 0
        %953 = vmatprep.subr.bf16.mxu0 0
        %954 = vmatpush1.bf16.msra.mxu0 0
        %955 = vmatprep.subr.bf16.mxu0 0
        %956 = vmatpush1.bf16.msra.mxu0 0
        %957 = vmatprep.mubr.bf16.mxu0 0
        %958 = vmatmul.mubr.bf16.gmra.mrb[0].mxu0 %v914
        %v959 = vpop.f32.mrb[0].mxu0
        %v960 = vadd.f32 0.0, %v959
        %v961 = vpop.f32.mrb[0].mxu0
        %v962 = vadd.f32 0.0, %v961
        %v963 = vpop.f32.mrb[0].mxu0
        %v964 = vpop.f32.mrb[0].mxu0
        %965 = vdwg.mxu0
        %966 = vmatprep.subr.bf16.mxu0 0
        %967 = vmatpush1.bf16.msra.mxu0 %v874
        %968 = vmatprep.subr.bf16.mxu0 0
        %969 = vmatpush1.bf16.msra.mxu0 %v886
        %970 = vmatprep.subr.bf16.mxu0 0
        %971 = vmatpush1.bf16.msra.mxu0 %v898
        %972 = vmatprep.subr.bf16.mxu0 0
        %973 = vmatpush1.bf16.msra.mxu0 %v910
        %974 = vmatprep.subr.bf16.mxu0 0
        %975 = vmatpush1.bf16.msra.mxu0 %v923
        %976 = vmatprep.subr.bf16.mxu0 0
        %977 = vmatpush1.bf16.msra.mxu0 0
        %978 = vmatprep.subr.bf16.mxu0 0
        %979 = vmatpush1.bf16.msra.mxu0 0
        %980 = vmatprep.subr.bf16.mxu0 0
        %981 = vmatpush1.bf16.msra.mxu0 0
        %982 = vmatprep.subr.bf16.mxu0 0
        %983 = vmatpush1.bf16.msra.mxu0 0
        %984 = vmatprep.subr.bf16.mxu0 0
        %985 = vmatpush1.bf16.msra.mxu0 0
        %986 = vmatprep.subr.bf16.mxu0 0
        %987 = vmatpush1.bf16.msra.mxu0 0
        %988 = vmatprep.subr.bf16.mxu0 0
        %989 = vmatpush1.bf16.msra.mxu0 0
        %990 = vmatprep.subr.bf16.mxu0 0
        %991 = vmatpush1.bf16.msra.mxu0 0
        %992 = vmatprep.subr.bf16.mxu0 0
        %993 = vmatpush1.bf16.msra.mxu0 0
        %994 = vmatprep.subr.bf16.mxu0 0
        %995 = vmatpush1.bf16.msra.mxu0 0
        %996 = vmatprep.subr.bf16.mxu0 0
        %997 = vmatpush1.bf16.msra.mxu0 0
        %998 = vmatprep.mubr.bf16.mxu0 0
        %999 = vmatmul.mubr.bf16.gmra.mrb[0].mxu0 %v914
        %v1000 = vpop.f32.mrb[0].mxu0
        %v1001 = vadd.f32 0.0, %v1000
        %v1002 = vpop.f32.mrb[0].mxu0
        %v1003 = vpop.f32.mrb[0].mxu0
        %v1004 = vpop.f32.mrb[0].mxu0
        %1005 = vdwg.mxu0
        %v1006 = vmul.f32 %v960, %v704
        %v1007 = vmul.f32 %v962, %v708
        %v1008 = vmul.f32 %v1001, %v712
        %v1009 = vadd.f32 %v1006, %v1007
        %v1010 = vsel %vm720, %v1008, 0.0
        %v1011 = vadd.f32 %v1009, %v1010
        %1012 = vadd.xlane.f32.xlu0 %v1011
        %v1013 = vpop.xlane.xlu0 %1012
        %v1014 = vmul.f32 %v1013, 0.00390625
        %v1015 = vsub.f32 %v1006, %v1014
        %v1016 = vsub.f32 %v1007, %v1014
        %v1017 = vsub.f32 %v1008, %v1014
        %v1018 = vmul.f32 %v1015, %v704
        %v1019 = vmul.f32 %v1016, %v708
        %v1020 = vmul.f32 %v1017, %v712
        %v1021 = vmul.f32 %v1018, %v1018
        %v1022 = vmul.f32 %v1019, %v1019
        %v1023 = vmul.f32 %v1020, %v1020
        %v1024 = vadd.f32 %v1021, %v1022
        %v1025 = vsel %vm720, %v1023, 0.0
        %v1026 = vadd.f32 %v1024, %v1025
        %1027 = vadd.xlane.f32.xlu0 %v1026
        %v1028 = vpop.xlane.xlu0 %1027
        %v1029 = vmul.f32 %v1028, 0.003921569
        %v1030 = vrsqrt.pop %v1029
        %v1031 = vmul.f32 %v1029, %v1030
        %vm1032 = vcmp.eq.f32.partialorder %v1029, inf
        %v1033 = vsel %vm1032, %v1029, %v1031
        %vm1034 = vcmp.eq.f32.partialorder %v1029, 0.0
        %v1035 = vand.u32 %v1029, 2147483648
        %v1036 = vsel %vm1034, %v1035, %v1033
        %v1037 = vadd.f32 %v1036, 1e-05
        %v1038 = vrcp.pop %v1037
        %v1039 = vmul.f32 %v473, %v1038
        %v1040 = vmul.f32 %v1014, %v1039
        %v1041 = vsub.f32 %v472, %v1040
        %1043 = vset.pattern.permute.xlu0 0
        %1044 = vperm.xlu0 %1043, %v1039
        %v1045 = vpop.permute.xlu0 %1044
        %v1047 = vmul.f32 %v1006, %v1045
        %v1048 = vmul.f32 %v1007, %v1045
        %v1049 = vmul.f32 %v1008, %v1045
        %1051 = vset.pattern.permute.xlu0 0
        %1052 = vperm.xlu0 %1051, %v1041
        %v1053 = vpop.permute.xlu0 %1052
        %v1055 = vadd.f32 %v1047, %v1053
        %v1056 = vadd.f32 %v1048, %v1053
        %v1057 = vadd.f32 %v1049, %v1053
        %v1058 = vmul.f32 %v1055, %v704
        %v1059 = vmul.f32 %v1056, %v708
        %v1060 = vmul.f32 %v1057, %v712
        %v1061 = vpack.c.bf16 %v1058, %v1058
        %v1062 = vpack.c.bf16 %v1059, %v1059
        %v1063 = vpack.c.bf16 %v1060, %v1060
        %1067 = vrot.lane.b32.xlu0 %v1061, 19
        %v1068 = vpop.permute.xlu0 %1067
        %1069 = vrot.lane.b32.xlu0 %v1062, 19
        %v1070 = vpop.permute.xlu0 %1069
        %1071 = vrot.lane.b32.xlu0 %v1063, 19
        %v1072 = vpop.permute.xlu0 %1071
        %v1073 = vsel %vm787, %v1068, %v1070
        %v1074 = vsel %vm787, %v1070, %v1072
        %v1076 = vsel %vm790, 0, %v1068
        %v1078 = vsel %vm794, %v1074, 0
        %v1079 = vld [vmem:[%s395] sm:$0xff]
        %v1080 = vld [vmem:[%s395 + $0x8] sm:$0xf]
        %v1083 = vunpack.c.l.b16 %v1079
        %v1084 = vunpack.c.h.b16 %v1079
        %v1085 = vunpack.c.l.b16 %v1080
        %v1086 = vpack.c.b16 %v1083, %v1083
        %v1087 = vpack.c.b16 %v1084, %v1084
        %v1088 = vpack.c.b16 %v1085, %v1085
        %1089 = vrot.lane.b32.xlu0 %v1086, 127
        %v1090 = vpop.permute.xlu0 %1089
        %1091 = vrot.lane.b32.xlu0 %v1087, 127
        %v1092 = vpop.permute.xlu0 %1091
        %1093 = vrot.lane.b32.xlu0 %v1088, 127
        %v1094 = vpop.permute.xlu0 %1093
        %v1095 = vsel %vm490, %v1090, %v1092
        %v1096 = vsel %vm490, %v1092, %v1094
        %1097 = vrot.lane.b32.xlu0 %v1086, 126
        %v1098 = vpop.permute.xlu0 %1097
        %1099 = vrot.lane.b32.xlu0 %v1087, 126
        %v1100 = vpop.permute.xlu0 %1099
        %1101 = vrot.lane.b32.xlu0 %v1088, 126
        %v1102 = vpop.permute.xlu0 %1101
        %v1103 = vsel %vm499, %v1098, %v1100
        %v1104 = vsel %vm499, %v1100, %v1102
        %1105 = vrot.lane.b32.xlu0 %v1086, 110
        %v1106 = vpop.permute.xlu0 %1105
        %1107 = vrot.lane.b32.xlu0 %v1087, 110
        %v1108 = vpop.permute.xlu0 %1107
        %1109 = vrot.lane.b32.xlu0 %v1088, 110
        %v1110 = vpop.permute.xlu0 %1109
        %v1111 = vsel %vm508, %v1106, %v1108
        %v1112 = vsel %vm508, %v1108, %v1110
        %1113 = vrot.lane.b32.xlu0 %v1086, 109
        %v1114 = vpop.permute.xlu0 %1113
        %1115 = vrot.lane.b32.xlu0 %v1087, 109
        %v1116 = vpop.permute.xlu0 %1115
        %1117 = vrot.lane.b32.xlu0 %v1088, 109
        %v1118 = vpop.permute.xlu0 %1117
        %v1119 = vsel %vm517, %v1114, %v1116
        %v1120 = vsel %vm517, %v1116, %v1118
        %1121 = vrot.lane.b32.xlu0 %v1086, 108
        %v1122 = vpop.permute.xlu0 %1121
        %1123 = vrot.lane.b32.xlu0 %v1087, 108
        %v1124 = vpop.permute.xlu0 %1123
        %1125 = vrot.lane.b32.xlu0 %v1088, 108
        %v1126 = vpop.permute.xlu0 %1125
        %v1127 = vsel %vm526, %v1122, %v1124
        %v1128 = vsel %vm526, %v1124, %v1126
        %1129 = vrot.lane.b32.xlu0 %v1086, 92
        %v1130 = vpop.permute.xlu0 %1129
        %1131 = vrot.lane.b32.xlu0 %v1087, 92
        %v1132 = vpop.permute.xlu0 %1131
        %1133 = vrot.lane.b32.xlu0 %v1088, 92
        %v1134 = vpop.permute.xlu0 %1133
        %v1135 = vsel %vm535, %v1130, %v1132
        %v1136 = vsel %vm535, %v1132, %v1134
        %1137 = vrot.lane.b32.xlu0 %v1086, 91
        %v1138 = vpop.permute.xlu0 %1137
        %1139 = vrot.lane.b32.xlu0 %v1087, 91
        %v1140 = vpop.permute.xlu0 %1139
        %1141 = vrot.lane.b32.xlu0 %v1088, 91
        %v1142 = vpop.permute.xlu0 %1141
        %v1143 = vsel %vm544, %v1138, %v1140
        %v1144 = vsel %vm544, %v1140, %v1142
        %1145 = vrot.lane.b32.xlu0 %v1086, 90
        %v1146 = vpop.permute.xlu0 %1145
        %1147 = vrot.lane.b32.xlu0 %v1087, 90
        %v1148 = vpop.permute.xlu0 %1147
        %1149 = vrot.lane.b32.xlu0 %v1088, 90
        %v1150 = vpop.permute.xlu0 %1149
        %v1151 = vsel %vm553, %v1146, %v1148
        %v1152 = vsel %vm553, %v1148, %v1150
        %v1155 = vrot.slane %v1076, 4
        %v1156 = vrot.slane %v1073, 4
        %v1157 = vrot.slane %v1078, 4
        %1158 = vrot.lane.b32.xlu0 %v1076, 127
        %v1159 = vpop.permute.xlu0 %1158
        %1160 = vrot.lane.b32.xlu0 %v1073, 127
        %v1161 = vpop.permute.xlu0 %1160
        %1162 = vrot.lane.b32.xlu0 %v1078, 127
        %v1163 = vpop.permute.xlu0 %1162
        %v1164 = vsel %vm490, %v1159, %v1161
        %v1165 = vsel %vm490, %v1161, %v1163
        %1166 = vrot.lane.b32.xlu0 %v1155, 126
        %v1167 = vpop.permute.xlu0 %1166
        %1168 = vrot.lane.b32.xlu0 %v1156, 126
        %v1169 = vpop.permute.xlu0 %1168
        %1170 = vrot.lane.b32.xlu0 %v1157, 126
        %v1171 = vpop.permute.xlu0 %1170
        %v1172 = vsel %vm499, %v1167, %v1169
        %v1173 = vsel %vm499, %v1169, %v1171
        %1174 = vrot.lane.b32.xlu0 %v1076, 110
        %v1175 = vpop.permute.xlu0 %1174
        %1176 = vrot.lane.b32.xlu0 %v1073, 110
        %v1177 = vpop.permute.xlu0 %1176
        %1178 = vrot.lane.b32.xlu0 %v1078, 110
        %v1179 = vpop.permute.xlu0 %1178
        %v1180 = vsel %vm508, %v1175, %v1177
        %v1181 = vsel %vm508, %v1177, %v1179
        %1182 = vrot.lane.b32.xlu0 %v1155, 109
        %v1183 = vpop.permute.xlu0 %1182
        %1184 = vrot.lane.b32.xlu0 %v1156, 109
        %v1185 = vpop.permute.xlu0 %1184
        %1186 = vrot.lane.b32.xlu0 %v1157, 109
        %v1187 = vpop.permute.xlu0 %1186
        %v1188 = vsel %vm517, %v1183, %v1185
        %v1189 = vsel %vm517, %v1185, %v1187
        %1190 = vrot.lane.b32.xlu0 %v1076, 108
        %v1191 = vpop.permute.xlu0 %1190
        %1192 = vrot.lane.b32.xlu0 %v1073, 108
        %v1193 = vpop.permute.xlu0 %1192
        %1194 = vrot.lane.b32.xlu0 %v1078, 108
        %v1195 = vpop.permute.xlu0 %1194
        %v1196 = vsel %vm526, %v1191, %v1193
        %v1197 = vsel %vm526, %v1193, %v1195
        %1198 = vrot.lane.b32.xlu0 %v1155, 92
        %v1199 = vpop.permute.xlu0 %1198
        %1200 = vrot.lane.b32.xlu0 %v1156, 92
        %v1201 = vpop.permute.xlu0 %1200
        %1202 = vrot.lane.b32.xlu0 %v1157, 92
        %v1203 = vpop.permute.xlu0 %1202
        %v1204 = vsel %vm535, %v1199, %v1201
        %v1205 = vsel %vm535, %v1201, %v1203
        %v1208 = vsel %vm556, %v1086, %v1095
        %v1212 = vsel %vm556, %v1087, %v1096
        %v1216 = vsel %vm556, %v1088, %v1094
        %v1220 = vsel %vm556, %v1103, %v1111
        %v1224 = vsel %vm556, %v1104, %v1112
        %v1228 = vsel %vm556, %v1102, %v1110
        %v1232 = vsel %vm556, %v1119, %v1127
        %v1236 = vsel %vm556, %v1120, %v1128
        %v1240 = vsel %vm556, %v1118, %v1126
        %v1244 = vsel %vm556, %v1135, %v1143
        %v1248 = vsel %vm556, %v1136, %v1144
        %v1252 = vsel %vm556, %v1134, %v1142
        %v1256 = vsel %vm556, %v1151, %v1155
        %v1260 = vsel %vm556, %v1152, %v1156
        %v1264 = vsel %vm556, %v1150, %v1157
        %v1268 = vsel %vm556, %v1164, %v1172
        %v1272 = vsel %vm556, %v1165, %v1173
        %v1276 = vsel %vm556, %v1163, %v1171
        %v1280 = vsel %vm556, %v1180, %v1188
        %v1284 = vsel %vm556, %v1181, %v1189
        %v1288 = vsel %vm556, %v1179, %v1187
        %v1292 = vsel %vm556, %v1196, %v1204
        %v1296 = vsel %vm556, %v1197, %v1205
        %v1300 = vsel %vm556, %v1195, %v1203
        %1302 = vrot.lane.b32.xlu0 %v1155, 127
        %v1303 = vpop.permute.xlu0 %1302
        %1304 = vrot.lane.b32.xlu0 %v1156, 127
        %v1305 = vpop.permute.xlu0 %1304
        %1306 = vrot.lane.b32.xlu0 %v1157, 127
        %v1307 = vpop.permute.xlu0 %1306
        %v1308 = vsel %vm490, %v1303, %v1305
        %v1309 = vsel %vm490, %v1305, %v1307
        %v1311 = vsel %vm556, %v1076, %v1308
        %v1314 = vsel %vm556, %v1073, %v1309
        %v1316 = vsel %vm556, %v1078, %v1307
        %1320 = vrot.lane.b32.xlu0 %v1311, 91
        %v1321 = vpop.permute.xlu0 %1320
        %1322 = vrot.lane.b32.xlu0 %v1314, 91
        %v1323 = vpop.permute.xlu0 %1322
        %1324 = vrot.lane.b32.xlu0 %v1316, 91
        %v1325 = vpop.permute.xlu0 %1324
        %v1326 = vsel %vm544, %v1321, %v1323
        %v1327 = vsel %vm544, %v1323, %v1325
        %v1331 = vld [vmem:[%s8] sm:$0xff]
        %1333 = vset.pattern.permute.xlu0 0
        %1334 = vperm.xlu0 %1333, %v1331
        %v1335 = vpop.permute.xlu0 %1334
        %v1337 = vld [vmem:[%s9] sm:$0x3]
        %v1338 = vld [vmem:[%s7] sm:$0xff]
        %v1340 = vunpack.c.l.b16 %v1338
        %v1341 = vunpack.c.h.b16 %v1338
        %v1342 = vpack.c.b16 %v1340, %v1340
        %v1343 = vpack.c.b16 %v1341, %v1341
        %vm1345 = vcmask 130048
        %v1347 = vsel %vm1345, %v1343, 0
        %1349 = vmatprep.subr.bf16.mxu0 %v1212
        %1350 = vmatpush1.bf16.msra.mxu0 %v1208
        %1351 = vmatprep.subr.bf16.mxu0 %v1224
        %1352 = vmatpush1.bf16.msra.mxu0 %v1220
        %1353 = vmatprep.subr.bf16.mxu0 %v1236
        %1354 = vmatpush1.bf16.msra.mxu0 %v1232
        %1355 = vmatprep.subr.bf16.mxu0 %v1248
        %1356 = vmatpush1.bf16.msra.mxu0 %v1244
        %1357 = vmatprep.subr.bf16.mxu0 %v1260
        %1358 = vmatpush1.bf16.msra.mxu0 %v1256
        %1359 = vmatprep.subr.bf16.mxu0 %v1272
        %1360 = vmatpush1.bf16.msra.mxu0 %v1268
        %1361 = vmatprep.subr.bf16.mxu0 %v1284
        %1362 = vmatpush1.bf16.msra.mxu0 %v1280
        %1363 = vmatprep.subr.bf16.mxu0 %v1296
        %1364 = vmatpush1.bf16.msra.mxu0 %v1292
        %1365 = vmatprep.subr.bf16.mxu0 %v1327
        %1366 = vmatpush1.bf16.msra.mxu0 %v1326
        %1367 = vmatprep.subr.bf16.mxu0 0
        %1368 = vmatpush1.bf16.msra.mxu0 0
        %1369 = vmatprep.subr.bf16.mxu0 0
        %1370 = vmatpush1.bf16.msra.mxu0 0
        %1371 = vmatprep.subr.bf16.mxu0 0
        %1372 = vmatpush1.bf16.msra.mxu0 0
        %1373 = vmatprep.subr.bf16.mxu0 0
        %1374 = vmatpush1.bf16.msra.mxu0 0
        %1375 = vmatprep.subr.bf16.mxu0 0
        %1376 = vmatpush1.bf16.msra.mxu0 0
        %1377 = vmatprep.subr.bf16.mxu0 0
        %1378 = vmatpush1.bf16.msra.mxu0 0
        %1379 = vmatprep.subr.bf16.mxu0 0
        %1380 = vmatpush1.bf16.msra.mxu0 0
        %1381 = vmatprep.mubr.bf16.mxu0 %v1347
        %1382 = vmatmul.mubr.bf16.gmra.mrb[0].mxu0 %v1342
        %v1383 = vpop.f32.mrb[0].mxu0
        %v1384 = vadd.f32 %v1335, %v1383
        %v1385 = vpop.f32.mrb[0].mxu0
        %v1386 = vadd.f32 %v1335, %v1385
        %v1387 = vpop.f32.mrb[0].mxu0
        %v1388 = vpop.f32.mrb[0].mxu0
        %1389 = vdwg.mxu0
        %1390 = vmatprep.subr.bf16.mxu0 0
        %1391 = vmatpush1.bf16.msra.mxu0 %v1216
        %1392 = vmatprep.subr.bf16.mxu0 0
        %1393 = vmatpush1.bf16.msra.mxu0 %v1228
        %1394 = vmatprep.subr.bf16.mxu0 0
        %1395 = vmatpush1.bf16.msra.mxu0 %v1240
        %1396 = vmatprep.subr.bf16.mxu0 0
        %1397 = vmatpush1.bf16.msra.mxu0 %v1252
        %1398 = vmatprep.subr.bf16.mxu0 0
        %1399 = vmatpush1.bf16.msra.mxu0 %v1264
        %1400 = vmatprep.subr.bf16.mxu0 0
        %1401 = vmatpush1.bf16.msra.mxu0 %v1276
        %1402 = vmatprep.subr.bf16.mxu0 0
        %1403 = vmatpush1.bf16.msra.mxu0 %v1288
        %1404 = vmatprep.subr.bf16.mxu0 0
        %1405 = vmatpush1.bf16.msra.mxu0 %v1300
        %1406 = vmatprep.subr.bf16.mxu0 0
        %1407 = vmatpush1.bf16.msra.mxu0 %v1325
        %1408 = vmatprep.subr.bf16.mxu0 0
        %1409 = vmatpush1.bf16.msra.mxu0 0
        %1410 = vmatprep.subr.bf16.mxu0 0
        %1411 = vmatpush1.bf16.msra.mxu0 0
        %1412 = vmatprep.subr.bf16.mxu0 0
        %1413 = vmatpush1.bf16.msra.mxu0 0
        %1414 = vmatprep.subr.bf16.mxu0 0
        %1415 = vmatpush1.bf16.msra.mxu0 0
        %1416 = vmatprep.subr.bf16.mxu0 0
        %1417 = vmatpush1.bf16.msra.mxu0 0
        %1418 = vmatprep.subr.bf16.mxu0 0
        %1419 = vmatpush1.bf16.msra.mxu0 0
        %1420 = vmatprep.subr.bf16.mxu0 0
        %1421 = vmatpush1.bf16.msra.mxu0 0
        %1422 = vmatprep.mubr.bf16.mxu0 %v1347
        %1423 = vmatmul.mubr.bf16.gmra.mrb[0].mxu0 %v1342
        %v1424 = vpop.f32.mrb[0].mxu0
        %v1425 = vadd.f32 %v1335, %v1424
        %v1426 = vpop.f32.mrb[0].mxu0
        %v1427 = vpop.f32.mrb[0].mxu0
        %v1428 = vpop.f32.mrb[0].mxu0
        %1429 = vdwg.mxu0
        %v1430 = vmax.f32 %v1384, 0.0
        %v1431 = vmax.f32 %v1386, 0.0
        %v1432 = vmax.f32 %v1425, 0.0
        %1433 = vst [vmem:[%s444] sm:$0xff] %v1430
        %1434 = vst [vmem:[%s444 + $0x8] sm:$0xff] %v1431
        %1435 = vst.msk [vmem:[%s444 + $0x10] sm:$0xff] %vm720, %v1432
        %v1436 = vpack.c.bf16 %v1430, %v1430
        %v1437 = vpack.c.bf16 %v1431, %v1431
        %v1438 = vpack.c.bf16 %v1432, %v1432
        %vm1439 = vcmask 64512
        %v1441 = vsel %vm1439, %v1337, 0
        %v1444 = vsel %vm556, %v1436, 0
        %v1447 = vsel %vm556, %v1437, 0
        %v1450 = vsel %vm556, %v1438, 0
        %1452 = vmatprep.subr.bf16.mxu0 %v1447
        %1453 = vmatpush1.bf16.msra.mxu0 %v1444
        %1454 = vmatprep.subr.bf16.mxu0 0
        %1455 = vmatpush1.bf16.msra.mxu0 0
        %1456 = vmatprep.subr.bf16.mxu0 0
        %1457 = vmatpush1.bf16.msra.mxu0 0
        %1458 = vmatprep.subr.bf16.mxu0 0
        %1459 = vmatpush1.bf16.msra.mxu0 0
        %1460 = vmatprep.subr.bf16.mxu0 0
        %1461 = vmatpush1.bf16.msra.mxu0 0
        %1462 = vmatprep.subr.bf16.mxu0 0
        %1463 = vmatpush1.bf16.msra.mxu0 0
        %1464 = vmatprep.subr.bf16.mxu0 0
        %1465 = vmatpush1.bf16.msra.mxu0 0
        %1466 = vmatprep.subr.bf16.mxu0 0
        %1467 = vmatpush1.bf16.msra.mxu0 0
        %1468 = vmatprep.subr.bf16.mxu0 0
        %1469 = vmatpush1.bf16.msra.mxu0 0
        %1470 = vmatprep.subr.bf16.mxu0 0
        %1471 = vmatpush1.bf16.msra.mxu0 0
        %1472 = vmatprep.subr.bf16.mxu0 0
        %1473 = vmatpush1.bf16.msra.mxu0 0
        %1474 = vmatprep.subr.bf16.mxu0 0
        %1475 = vmatpush1.bf16.msra.mxu0 0
        %1476 = vmatprep.subr.bf16.mxu0 0
        %1477 = vmatpush1.bf16.msra.mxu0 0
        %1478 = vmatprep.subr.bf16.mxu0 0
        %1479 = vmatpush1.bf16.msra.mxu0 0
        %1480 = vmatprep.subr.bf16.mxu0 0
        %1481 = vmatpush1.bf16.msra.mxu0 0
        %1482 = vmatprep.subr.bf16.mxu0 0
        %1483 = vmatpush1.bf16.msra.mxu0 0
        %1484 = vmatprep.mubr.bf16.mxu0 0
        %1485 = vmatmul.mubr.bf16.gmra.mrb[0].mxu0 %v1441
        %v1486 = vpop.f32.mrb[0].mxu0
        %v1487 = vadd.f32 0.0, %v1486
        %v1488 = vpop.f32.mrb[0].mxu0
        %v1489 = vadd.f32 0.0, %v1488
        %v1490 = vpop.f32.mrb[0].mxu0
        %v1491 = vpop.f32.mrb[0].mxu0
        %1492 = vdwg.mxu0
        %1493 = vmatprep.subr.bf16.mxu0 0
        %1494 = vmatpush1.bf16.msra.mxu0 %v1450
        %1495 = vmatprep.subr.bf16.mxu0 0
        %1496 = vmatpush1.bf16.msra.mxu0 0
        %1497 = vmatprep.subr.bf16.mxu0 0
        %1498 = vmatpush1.bf16.msra.mxu0 0
        %1499 = vmatprep.subr.bf16.mxu0 0
        %1500 = vmatpush1.bf16.msra.mxu0 0
        %1501 = vmatprep.subr.bf16.mxu0 0
        %1502 = vmatpush1.bf16.msra.mxu0 0
        %1503 = vmatprep.subr.bf16.mxu0 0
        %1504 = vmatpush1.bf16.msra.mxu0 0
        %1505 = vmatprep.subr.bf16.mxu0 0
        %1506 = vmatpush1.bf16.msra.mxu0 0
        %1507 = vmatprep.subr.bf16.mxu0 0
        %1508 = vmatpush1.bf16.msra.mxu0 0
        %1509 = vmatprep.subr.bf16.mxu0 0
        %1510 = vmatpush1.bf16.msra.mxu0 0
        %1511 = vmatprep.subr.bf16.mxu0 0
        %1512 = vmatpush1.bf16.msra.mxu0 0
        %1513 = vmatprep.subr.bf16.mxu0 0
        %1514 = vmatpush1.bf16.msra.mxu0 0
        %1515 = vmatprep.subr.bf16.mxu0 0
        %1516 = vmatpush1.bf16.msra.mxu0 0
        %1517 = vmatprep.subr.bf16.mxu0 0
        %1518 = vmatpush1.bf16.msra.mxu0 0
        %1519 = vmatprep.subr.bf16.mxu0 0
        %1520 = vmatpush1.bf16.msra.mxu0 0
        %1521 = vmatprep.subr.bf16.mxu0 0
        %1522 = vmatpush1.bf16.msra.mxu0 0
        %1523 = vmatprep.subr.bf16.mxu0 0
        %1524 = vmatpush1.bf16.msra.mxu0 0
        %1525 = vmatprep.mubr.bf16.mxu0 0
        %1526 = vmatmul.mubr.bf16.gmra.mrb[0].mxu0 %v1441
        %v1527 = vpop.f32.mrb[0].mxu0
        %v1528 = vadd.f32 0.0, %v1527
        %v1529 = vpop.f32.mrb[0].mxu0
        %v1530 = vpop.f32.mrb[0].mxu0
        %v1531 = vpop.f32.mrb[0].mxu0
        %1532 = vdwg.mxu0
        %v1533 = vtanh.pop %v1487
        %v1534 = vtanh.pop %v1489
        %v1535 = vtanh.pop %v1528
        %v1538 = vcombine.low %v1533, %v1534
        %1540 = vst [vmem:[%s469] sm:$0x77] %v1538
        %vm1541 = vcmask 256000
        %1542 = vst.msk [vmem:[%s469 + $0x8] sm:$0x7] %vm1541, %v1535
        %s1543 = scalar_lea.vmem %s7, 8
        %v1544 = vld [vmem:[%s1543] sm:$0xff]
        %v1546 = vunpack.c.l.b16 %v1544
        %v1547 = vunpack.c.h.b16 %v1544
        %v1548 = vpack.c.b16 %v1546, %v1546
        %v1549 = vpack.c.b16 %v1547, %v1547
        %v1552 = vsel %vm1345, %v1549, 0
        %1554 = vmatprep.subr.bf16.mxu0 %v1212
        %1555 = vmatpush1.bf16.msra.mxu0 %v1208
        %1556 = vmatprep.subr.bf16.mxu0 %v1224
        %1557 = vmatpush1.bf16.msra.mxu0 %v1220
        %1558 = vmatprep.subr.bf16.mxu0 %v1236
        %1559 = vmatpush1.bf16.msra.mxu0 %v1232
        %1560 = vmatprep.subr.bf16.mxu0 %v1248
        %1561 = vmatpush1.bf16.msra.mxu0 %v1244
        %1562 = vmatprep.subr.bf16.mxu0 %v1260
        %1563 = vmatpush1.bf16.msra.mxu0 %v1256
        %1564 = vmatprep.subr.bf16.mxu0 %v1272
        %1565 = vmatpush1.bf16.msra.mxu0 %v1268
        %1566 = vmatprep.subr.bf16.mxu0 %v1284
        %1567 = vmatpush1.bf16.msra.mxu0 %v1280
        %1568 = vmatprep.subr.bf16.mxu0 %v1296
        %1569 = vmatpush1.bf16.msra.mxu0 %v1292
        %1570 = vmatprep.subr.bf16.mxu0 %v1327
        %1571 = vmatpush1.bf16.msra.mxu0 %v1326
        %1572 = vmatprep.subr.bf16.mxu0 0
        %1573 = vmatpush1.bf16.msra.mxu0 0
        %1574 = vmatprep.subr.bf16.mxu0 0
        %1575 = vmatpush1.bf16.msra.mxu0 0
        %1576 = vmatprep.subr.bf16.mxu0 0
        %1577 = vmatpush1.bf16.msra.mxu0 0
        %1578 = vmatprep.subr.bf16.mxu0 0
        %1579 = vmatpush1.bf16.msra.mxu0 0
        %1580 = vmatprep.subr.bf16.mxu0 0
        %1581 = vmatpush1.bf16.msra.mxu0 0
        %1582 = vmatprep.subr.bf16.mxu0 0
        %1583 = vmatpush1.bf16.msra.mxu0 0
        %1584 = vmatprep.subr.bf16.mxu0 0
        %1585 = vmatpush1.bf16.msra.mxu0 0
        %1586 = vmatprep.mubr.bf16.mxu0 %v1552
        %1587 = vmatmul.mubr.bf16.gmra.mrb[0].mxu0 %v1548
        %v1588 = vpop.f32.mrb[0].mxu0
        %v1589 = vadd.f32 %v1335, %v1588
        %v1590 = vpop.f32.mrb[0].mxu0
        %v1591 = vadd.f32 %v1335, %v1590
        %v1592 = vpop.f32.mrb[0].mxu0
        %v1593 = vpop.f32.mrb[0].mxu0
        %1594 = vdwg.mxu0
        %1595 = vmatprep.subr.bf16.mxu0 0
        %1596 = vmatpush1.bf16.msra.mxu0 %v1216
        %1597 = vmatprep.subr.bf16.mxu0 0
        %1598 = vmatpush1.bf16.msra.mxu0 %v1228
        %1599 = vmatprep.subr.bf16.mxu0 0
        %1600 = vmatpush1.bf16.msra.mxu0 %v1240
        %1601 = vmatprep.subr.bf16.mxu0 0
        %1602 = vmatpush1.bf16.msra.mxu0 %v1252
        %1603 = vmatprep.subr.bf16.mxu0 0
        %1604 = vmatpush1.bf16.msra.mxu0 %v1264
        %1605 = vmatprep.subr.bf16.mxu0 0
        %1606 = vmatpush1.bf16.msra.mxu0 %v1276
        %1607 = vmatprep.subr.bf16.mxu0 0
        %1608 = vmatpush1.bf16.msra.mxu0 %v1288
        %1609 = vmatprep.subr.bf16.mxu0 0
        %1610 = vmatpush1.bf16.msra.mxu0 %v1300
        %1611 = vmatprep.subr.bf16.mxu0 0
        %1612 = vmatpush1.bf16.msra.mxu0 %v1325
        %1613 = vmatprep.subr.bf16.mxu0 0
        %1614 = vmatpush1.bf16.msra.mxu0 0
        %1615 = vmatprep.subr.bf16.mxu0 0
        %1616 = vmatpush1.bf16.msra.mxu0 0
        %1617 = vmatprep.subr.bf16.mxu0 0
        %1618 = vmatpush1.bf16.msra.mxu0 0
        %1619 = vmatprep.subr.bf16.mxu0 0
        %1620 = vmatpush1.bf16.msra.mxu0 0
        %1621 = vmatprep.subr.bf16.mxu0 0
        %1622 = vmatpush1.bf16.msra.mxu0 0
        %1623 = vmatprep.subr.bf16.mxu0 0
        %1624 = vmatpush1.bf16.msra.mxu0 0
        %1625 = vmatprep.subr.bf16.mxu0 0
        %1626 = vmatpush1.bf16.msra.mxu0 0
        %1627 = vmatprep.mubr.bf16.mxu0 %v1552
        %1628 = vmatmul.mubr.bf16.gmra.mrb[0].mxu0 %v1548
        %v1629 = vpop.f32.mrb[0].mxu0
        %v1630 = vadd.f32 %v1335, %v1629
        %v1631 = vpop.f32.mrb[0].mxu0
        %v1632 = vpop.f32.mrb[0].mxu0
        %v1633 = vpop.f32.mrb[0].mxu0
        %1634 = vdwg.mxu0
        %v1635 = vmax.f32 %v1589, 0.0
        %v1636 = vmax.f32 %v1591, 0.0
        %v1637 = vmax.f32 %v1630, 0.0
        %s1638 = scalar_lea.vmem %s444, 24 [#allocation5]
        %1639 = vst [vmem:[%s1638] sm:$0xff] %v1635
        %1640 = vst [vmem:[%s1638 + $0x8] sm:$0xff] %v1636
        %1641 = vst.msk [vmem:[%s1638 + $0x10] sm:$0xff] %vm720, %v1637
        %v1642 = vpack.c.bf16 %v1635, %v1635
        %v1643 = vpack.c.bf16 %v1636, %v1636
        %v1644 = vpack.c.bf16 %v1637, %v1637
        %v1646 = vsel %vm556, %v1642, 0
        %v1649 = vsel %vm556, %v1643, 0
        %v1652 = vsel %vm556, %v1644, 0
        %1654 = vmatprep.subr.bf16.mxu0 %v1649
        %1655 = vmatpush1.bf16.msra.mxu0 %v1646
        %1656 = vmatprep.subr.bf16.mxu0 0
        %1657 = vmatpush1.bf16.msra.mxu0 0
        %1658 = vmatprep.subr.bf16.mxu0 0
        %1659 = vmatpush1.bf16.msra.mxu0 0
        %1660 = vmatprep.subr.bf16.mxu0 0
        %1661 = vmatpush1.bf16.msra.mxu0 0
        %1662 = vmatprep.subr.bf16.mxu0 0
        %1663 = vmatpush1.bf16.msra.mxu0 0
        %1664 = vmatprep.subr.bf16.mxu0 0
        %1665 = vmatpush1.bf16.msra.mxu0 0
        %1666 = vmatprep.subr.bf16.mxu0 0
        %1667 = vmatpush1.bf16.msra.mxu0 0
        %1668 = vmatprep.subr.bf16.mxu0 0
        %1669 = vmatpush1.bf16.msra.mxu0 0
        %1670 = vmatprep.subr.bf16.mxu0 0
        %1671 = vmatpush1.bf16.msra.mxu0 0
        %1672 = vmatprep.subr.bf16.mxu0 0
        %1673 = vmatpush1.bf16.msra.mxu0 0
        %1674 = vmatprep.subr.bf16.mxu0 0
        %1675 = vmatpush1.bf16.msra.mxu0 0
        %1676 = vmatprep.subr.bf16.mxu0 0
        %1677 = vmatpush1.bf16.msra.mxu0 0
        %1678 = vmatprep.subr.bf16.mxu0 0
        %1679 = vmatpush1.bf16.msra.mxu0 0
        %1680 = vmatprep.subr.bf16.mxu0 0
        %1681 = vmatpush1.bf16.msra.mxu0 0
        %1682 = vmatprep.subr.bf16.mxu0 0
        %1683 = vmatpush1.bf16.msra.mxu0 0
        %1684 = vmatprep.subr.bf16.mxu0 0
        %1685 = vmatpush1.bf16.msra.mxu0 0
        %1686 = vmatprep.mubr.bf16.mxu0 0
        %1687 = vmatmul.mubr.bf16.gmra.mrb[0].mxu0 %v1441
        %v1688 = vpop.f32.mrb[0].mxu0
        %v1689 = vadd.f32 0.0, %v1688
        %v1690 = vpop.f32.mrb[0].mxu0
        %v1691 = vadd.f32 0.0, %v1690
        %v1692 = vpop.f32.mrb[0].mxu0
        %v1693 = vpop.f32.mrb[0].mxu0
        %1694 = vdwg.mxu0
        %1695 = vmatprep.subr.bf16.mxu0 0
        %1696 = vmatpush1.bf16.msra.mxu0 %v1652
        %1697 = vmatprep.subr.bf16.mxu0 0
        %1698 = vmatpush1.bf16.msra.mxu0 0
        %1699 = vmatprep.subr.bf16.mxu0 0
        %1700 = vmatpush1.bf16.msra.mxu0 0
        %1701 = vmatprep.subr.bf16.mxu0 0
        %1702 = vmatpush1.bf16.msra.mxu0 0
        %1703 = vmatprep.subr.bf16.mxu0 0
        %1704 = vmatpush1.bf16.msra.mxu0 0
        %1705 = vmatprep.subr.bf16.mxu0 0
        %1706 = vmatpush1.bf16.msra.mxu0 0
        %1707 = vmatprep.subr.bf16.mxu0 0
        %1708 = vmatpush1.bf16.msra.mxu0 0
        %1709 = vmatprep.subr.bf16.mxu0 0
        %1710 = vmatpush1.bf16.msra.mxu0 0
        %1711 = vmatprep.subr.bf16.mxu0 0
        %1712 = vmatpush1.bf16.msra.mxu0 0
        %1713 = vmatprep.subr.bf16.mxu0 0
        %1714 = vmatpush1.bf16.msra.mxu0 0
        %1715 = vmatprep.subr.bf16.mxu0 0
        %1716 = vmatpush1.bf16.msra.mxu0 0
        %1717 = vmatprep.subr.bf16.mxu0 0
        %1718 = vmatpush1.bf16.msra.mxu0 0
        %1719 = vmatprep.subr.bf16.mxu0 0
        %1720 = vmatpush1.bf16.msra.mxu0 0
        %1721 = vmatprep.subr.bf16.mxu0 0
        %1722 = vmatpush1.bf16.msra.mxu0 0
        %1723 = vmatprep.subr.bf16.mxu0 0
        %1724 = vmatpush1.bf16.msra.mxu0 0
        %1725 = vmatprep.subr.bf16.mxu0 0
        %1726 = vmatpush1.bf16.msra.mxu0 0
        %1727 = vmatprep.mubr.bf16.mxu0 0
        %1728 = vmatmul.mubr.bf16.gmra.mrb[0].mxu0 %v1441
        %v1729 = vpop.f32.mrb[0].mxu0
        %v1730 = vadd.f32 0.0, %v1729
        %v1731 = vpop.f32.mrb[0].mxu0
        %v1732 = vpop.f32.mrb[0].mxu0
        %v1733 = vpop.f32.mrb[0].mxu0
        %1734 = vdwg.mxu0
        %v1735 = vtanh.pop %v1689
        %v1736 = vtanh.pop %v1691
        %v1737 = vtanh.pop %v1730
        %v1740 = vcombine.low %v1735, %v1736
        %s1742 = scalar_lea.vmem %s469, 12
        %1743 = vst [vmem:[%s1742] sm:$0x77] %v1740
        %1744 = vst.msk [vmem:[%s1742 + $0x8] sm:$0x7] %vm1541, %v1737
        %s1745 = scalar_lea.vmem %s7, 16
        %v1746 = vld [vmem:[%s1745] sm:$0xff]
        %v1748 = vunpack.c.l.b16 %v1746
        %v1749 = vunpack.c.h.b16 %v1746
        %v1750 = vpack.c.b16 %v1748, %v1748
        %v1751 = vpack.c.b16 %v1749, %v1749
        %v1754 = vsel %vm1345, %v1751, 0
        %1756 = vmatprep.subr.bf16.mxu0 %v1212
        %1757 = vmatpush1.bf16.msra.mxu0 %v1208
        %1758 = vmatprep.subr.bf16.mxu0 %v1224
        %1759 = vmatpush1.bf16.msra.mxu0 %v1220
        %1760 = vmatprep.subr.bf16.mxu0 %v1236
        %1761 = vmatpush1.bf16.msra.mxu0 %v1232
        %1762 = vmatprep.subr.bf16.mxu0 %v1248
        %1763 = vmatpush1.bf16.msra.mxu0 %v1244
        %1764 = vmatprep.subr.bf16.mxu0 %v1260
        %1765 = vmatpush1.bf16.msra.mxu0 %v1256
        %1766 = vmatprep.subr.bf16.mxu0 %v1272
        %1767 = vmatpush1.bf16.msra.mxu0 %v1268
        %1768 = vmatprep.subr.bf16.mxu0 %v1284
        %1769 = vmatpush1.bf16.msra.mxu0 %v1280
        %1770 = vmatprep.subr.bf16.mxu0 %v1296
        %1771 = vmatpush1.bf16.msra.mxu0 %v1292
        %1772 = vmatprep.subr.bf16.mxu0 %v1327
        %1773 = vmatpush1.bf16.msra.mxu0 %v1326
        %1774 = vmatprep.subr.bf16.mxu0 0
        %1775 = vmatpush1.bf16.msra.mxu0 0
        %1776 = vmatprep.subr.bf16.mxu0 0
        %1777 = vmatpush1.bf16.msra.mxu0 0
        %1778 = vmatprep.subr.bf16.mxu0 0
        %1779 = vmatpush1.bf16.msra.mxu0 0
        %1780 = vmatprep.subr.bf16.mxu0 0
        %1781 = vmatpush1.bf16.msra.mxu0 0
        %1782 = vmatprep.subr.bf16.mxu0 0
        %1783 = vmatpush1.bf16.msra.mxu0 0
        %1784 = vmatprep.subr.bf16.mxu0 0
        %1785 = vmatpush1.bf16.msra.mxu0 0
        %1786 = vmatprep.subr.bf16.mxu0 0
        %1787 = vmatpush1.bf16.msra.mxu0 0
        %1788 = vmatprep.mubr.bf16.mxu0 %v1754
        %1789 = vmatmul.mubr.bf16.gmra.mrb[0].mxu0 %v1750
        %v1790 = vpop.f32.mrb[0].mxu0
        %v1791 = vadd.f32 %v1335, %v1790
        %v1792 = vpop.f32.mrb[0].mxu0
        %v1793 = vadd.f32 %v1335, %v1792
        %v1794 = vpop.f32.mrb[0].mxu0
        %v1795 = vpop.f32.mrb[0].mxu0
        %1796 = vdwg.mxu0
        %1797 = vmatprep.subr.bf16.mxu0 0
        %1798 = vmatpush1.bf16.msra.mxu0 %v1216
        %1799 = vmatprep.subr.bf16.mxu0 0
        %1800 = vmatpush1.bf16.msra.mxu0 %v1228
        %1801 = vmatprep.subr.bf16.mxu0 0
        %1802 = vmatpush1.bf16.msra.mxu0 %v1240
        %1803 = vmatprep.subr.bf16.mxu0 0
        %1804 = vmatpush1.bf16.msra.mxu0 %v1252
        %1805 = vmatprep.subr.bf16.mxu0 0
        %1806 = vmatpush1.bf16.msra.mxu0 %v1264
        %1807 = vmatprep.subr.bf16.mxu0 0
        %1808 = vmatpush1.bf16.msra.mxu0 %v1276
        %1809 = vmatprep.subr.bf16.mxu0 0
        %1810 = vmatpush1.bf16.msra.mxu0 %v1288
        %1811 = vmatprep.subr.bf16.mxu0 0
        %1812 = vmatpush1.bf16.msra.mxu0 %v1300
        %1813 = vmatprep.subr.bf16.mxu0 0
        %1814 = vmatpush1.bf16.msra.mxu0 %v1325
        %1815 = vmatprep.subr.bf16.mxu0 0
        %1816 = vmatpush1.bf16.msra.mxu0 0
        %1817 = vmatprep.subr.bf16.mxu0 0
        %1818 = vmatpush1.bf16.msra.mxu0 0
        %1819 = vmatprep.subr.bf16.mxu0 0
        %1820 = vmatpush1.bf16.msra.mxu0 0
        %1821 = vmatprep.subr.bf16.mxu0 0
        %1822 = vmatpush1.bf16.msra.mxu0 0
        %1823 = vmatprep.subr.bf16.mxu0 0
        %1824 = vmatpush1.bf16.msra.mxu0 0
        %1825 = vmatprep.subr.bf16.mxu0 0
        %1826 = vmatpush1.bf16.msra.mxu0 0
        %1827 = vmatprep.subr.bf16.mxu0 0
        %1828 = vmatpush1.bf16.msra.mxu0 0
        %1829 = vmatprep.mubr.bf16.mxu0 %v1754
        %1830 = vmatmul.mubr.bf16.gmra.mrb[0].mxu0 %v1750
        %v1831 = vpop.f32.mrb[0].mxu0
        %v1832 = vadd.f32 %v1335, %v1831
        %v1833 = vpop.f32.mrb[0].mxu0
        %v1834 = vpop.f32.mrb[0].mxu0
        %v1835 = vpop.f32.mrb[0].mxu0
        %1836 = vdwg.mxu0
        %v1837 = vmax.f32 %v1791, 0.0
        %v1838 = vmax.f32 %v1793, 0.0
        %v1839 = vmax.f32 %v1832, 0.0
        %s1840 = scalar_lea.vmem %s444, 48 [#allocation5]
        %1841 = vst [vmem:[%s1840] sm:$0xff] %v1837
        %1842 = vst [vmem:[%s1840 + $0x8] sm:$0xff] %v1838
        %1843 = vst.msk [vmem:[%s1840 + $0x10] sm:$0xff] %vm720, %v1839
        %v1844 = vpack.c.bf16 %v1837, %v1837
        %v1845 = vpack.c.bf16 %v1838, %v1838
        %v1846 = vpack.c.bf16 %v1839, %v1839
        %v1848 = vsel %vm556, %v1844, 0
        %v1851 = vsel %vm556, %v1845, 0
        %v1854 = vsel %vm556, %v1846, 0
        %1856 = vmatprep.subr.bf16.mxu0 %v1851
        %1857 = vmatpush1.bf16.msra.mxu0 %v1848
        %1858 = vmatprep.subr.bf16.mxu0 0
        %1859 = vmatpush1.bf16.msra.mxu0 0
        %1860 = vmatprep.subr.bf16.mxu0 0
        %1861 = vmatpush1.bf16.msra.mxu0 0
        %1862 = vmatprep.subr.bf16.mxu0 0
        %1863 = vmatpush1.bf16.msra.mxu0 0
        %1864 = vmatprep.subr.bf16.mxu0 0
        %1865 = vmatpush1.bf16.msra.mxu0 0
        %1866 = vmatprep.subr.bf16.mxu0 0
        %1867 = vmatpush1.bf16.msra.mxu0 0
        %1868 = vmatprep.subr.bf16.mxu0 0
        %1869 = vmatpush1.bf16.msra.mxu0 0
        %1870 = vmatprep.subr.bf16.mxu0 0
        %1871 = vmatpush1.bf16.msra.mxu0 0
        %1872 = vmatprep.subr.bf16.mxu0 0
        %1873 = vmatpush1.bf16.msra.mxu0 0
        %1874 = vmatprep.subr.bf16.mxu0 0
        %1875 = vmatpush1.bf16.msra.mxu0 0
        %1876 = vmatprep.subr.bf16.mxu0 0
        %1877 = vmatpush1.bf16.msra.mxu0 0
        %1878 = vmatprep.subr.bf16.mxu0 0
        %1879 = vmatpush1.bf16.msra.mxu0 0
        %1880 = vmatprep.subr.bf16.mxu0 0
        %1881 = vmatpush1.bf16.msra.mxu0 0
        %1882 = vmatprep.subr.bf16.mxu0 0
        %1883 = vmatpush1.bf16.msra.mxu0 0
        %1884 = vmatprep.subr.bf16.mxu0 0
        %1885 = vmatpush1.bf16.msra.mxu0 0
        %1886 = vmatprep.subr.bf16.mxu0 0
        %1887 = vmatpush1.bf16.msra.mxu0 0
        %1888 = vmatprep.mubr.bf16.mxu0 0
        %1889 = vmatmul.mubr.bf16.gmra.mrb[0].mxu0 %v1441
        %v1890 = vpop.f32.mrb[0].mxu0
        %v1891 = vadd.f32 0.0, %v1890
        %v1892 = vpop.f32.mrb[0].mxu0
        %v1893 = vadd.f32 0.0, %v1892
        %v1894 = vpop.f32.mrb[0].mxu0
        %v1895 = vpop.f32.mrb[0].mxu0
        %1896 = vdwg.mxu0
        %1897 = vmatprep.subr.bf16.mxu0 0
        %1898 = vmatpush1.bf16.msra.mxu0 %v1854
        %1899 = vmatprep.subr.bf16.mxu0 0
        %1900 = vmatpush1.bf16.msra.mxu0 0
        %1901 = vmatprep.subr.bf16.mxu0 0
        %1902 = vmatpush1.bf16.msra.mxu0 0
        %1903 = vmatprep.subr.bf16.mxu0 0
        %1904 = vmatpush1.bf16.msra.mxu0 0
        %1905 = vmatprep.subr.bf16.mxu0 0
        %1906 = vmatpush1.bf16.msra.mxu0 0
        %1907 = vmatprep.subr.bf16.mxu0 0
        %1908 = vmatpush1.bf16.msra.mxu0 0
        %1909 = vmatprep.subr.bf16.mxu0 0
        %1910 = vmatpush1.bf16.msra.mxu0 0
        %1911 = vmatprep.subr.bf16.mxu0 0
        %1912 = vmatpush1.bf16.msra.mxu0 0
        %1913 = vmatprep.subr.bf16.mxu0 0
        %1914 = vmatpush1.bf16.msra.mxu0 0
        %1915 = vmatprep.subr.bf16.mxu0 0
        %1916 = vmatpush1.bf16.msra.mxu0 0
        %1917 = vmatprep.subr.bf16.mxu0 0
        %1918 = vmatpush1.bf16.msra.mxu0 0
        %1919 = vmatprep.subr.bf16.mxu0 0
        %1920 = vmatpush1.bf16.msra.mxu0 0
        %1921 = vmatprep.subr.bf16.mxu0 0
        %1922 = vmatpush1.bf16.msra.mxu0 0
        %1923 = vmatprep.subr.bf16.mxu0 0
        %1924 = vmatpush1.bf16.msra.mxu0 0
        %1925 = vmatprep.subr.bf16.mxu0 0
        %1926 = vmatpush1.bf16.msra.mxu0 0
        %1927 = vmatprep.subr.bf16.mxu0 0
        %1928 = vmatpush1.bf16.msra.mxu0 0
        %1929 = vmatprep.mubr.bf16.mxu0 0
        %1930 = vmatmul.mubr.bf16.gmra.mrb[0].mxu0 %v1441
        %v1931 = vpop.f32.mrb[0].mxu0
        %v1932 = vadd.f32 0.0, %v1931
        %v1933 = vpop.f32.mrb[0].mxu0
        %v1934 = vpop.f32.mrb[0].mxu0
        %v1935 = vpop.f32.mrb[0].mxu0
        %1936 = vdwg.mxu0
        %v1937 = vtanh.pop %v1891
        %v1938 = vtanh.pop %v1893
        %v1939 = vtanh.pop %v1932
        %v1942 = vcombine.low %v1937, %v1938
        %s1944 = scalar_lea.vmem %s469, 24
        %1945 = vst [vmem:[%s1944] sm:$0x77] %v1942
        %1946 = vst.msk [vmem:[%s1944 + $0x8] sm:$0x7] %vm1541, %v1939
        %s1947 = scalar_lea.vmem %s7, 24
        %v1948 = vld [vmem:[%s1947] sm:$0xff]
        %v1950 = vunpack.c.l.b16 %v1948
        %v1951 = vunpack.c.h.b16 %v1948
        %v1952 = vpack.c.b16 %v1950, %v1950
        %v1953 = vpack.c.b16 %v1951, %v1951
        %v1956 = vsel %vm1345, %v1953, 0
        %1958 = vmatprep.subr.bf16.mxu0 %v1212
        %1959 = vmatpush1.bf16.msra.mxu0 %v1208
        %1960 = vmatprep.subr.bf16.mxu0 %v1224
        %1961 = vmatpush1.bf16.msra.mxu0 %v1220
        %1962 = vmatprep.subr.bf16.mxu0 %v1236
        %1963 = vmatpush1.bf16.msra.mxu0 %v1232
        %1964 = vmatprep.subr.bf16.mxu0 %v1248
        %1965 = vmatpush1.bf16.msra.mxu0 %v1244
        %1966 = vmatprep.subr.bf16.mxu0 %v1260
        %1967 = vmatpush1.bf16.msra.mxu0 %v1256
        %1968 = vmatprep.subr.bf16.mxu0 %v1272
        %1969 = vmatpush1.bf16.msra.mxu0 %v1268
        %1970 = vmatprep.subr.bf16.mxu0 %v1284
        %1971 = vmatpush1.bf16.msra.mxu0 %v1280
        %1972 = vmatprep.subr.bf16.mxu0 %v1296
        %1973 = vmatpush1.bf16.msra.mxu0 %v1292
        %1974 = vmatprep.subr.bf16.mxu0 %v1327
        %1975 = vmatpush1.bf16.msra.mxu0 %v1326
        %1976 = vmatprep.subr.bf16.mxu0 0
        %1977 = vmatpush1.bf16.msra.mxu0 0
        %1978 = vmatprep.subr.bf16.mxu0 0
        %1979 = vmatpush1.bf16.msra.mxu0 0
        %1980 = vmatprep.subr.bf16.mxu0 0
        %1981 = vmatpush1.bf16.msra.mxu0 0
        %1982 = vmatprep.subr.bf16.mxu0 0
        %1983 = vmatpush1.bf16.msra.mxu0 0
        %1984 = vmatprep.subr.bf16.mxu0 0
        %1985 = vmatpush1.bf16.msra.mxu0 0
        %1986 = vmatprep.subr.bf16.mxu0 0
        %1987 = vmatpush1.bf16.msra.mxu0 0
        %1988 = vmatprep.subr.bf16.mxu0 0
        %1989 = vmatpush1.bf16.msra.mxu0 0
        %1990 = vmatprep.mubr.bf16.mxu0 %v1956
        %1991 = vmatmul.mubr.bf16.gmra.mrb[0].mxu0 %v1952
        %v1992 = vpop.f32.mrb[0].mxu0
        %v1993 = vadd.f32 %v1335, %v1992
        %v1994 = vpop.f32.mrb[0].mxu0
        %v1995 = vadd.f32 %v1335, %v1994
        %v1996 = vpop.f32.mrb[0].mxu0
        %v1997 = vpop.f32.mrb[0].mxu0
        %1998 = vdwg.mxu0
        %1999 = vmatprep.subr.bf16.mxu0 0
        %2000 = vmatpush1.bf16.msra.mxu0 %v1216
        %2001 = vmatprep.subr.bf16.mxu0 0
        %2002 = vmatpush1.bf16.msra.mxu0 %v1228
        %2003 = vmatprep.subr.bf16.mxu0 0
        %2004 = vmatpush1.bf16.msra.mxu0 %v1240
        %2005 = vmatprep.subr.bf16.mxu0 0
        %2006 = vmatpush1.bf16.msra.mxu0 %v1252
        %2007 = vmatprep.subr.bf16.mxu0 0
        %2008 = vmatpush1.bf16.msra.mxu0 %v1264
        %2009 = vmatprep.subr.bf16.mxu0 0
        %2010 = vmatpush1.bf16.msra.mxu0 %v1276
        %2011 = vmatprep.subr.bf16.mxu0 0
        %2012 = vmatpush1.bf16.msra.mxu0 %v1288
        %2013 = vmatprep.subr.bf16.mxu0 0
        %2014 = vmatpush1.bf16.msra.mxu0 %v1300
        %2015 = vmatprep.subr.bf16.mxu0 0
        %2016 = vmatpush1.bf16.msra.mxu0 %v1325
        %2017 = vmatprep.subr.bf16.mxu0 0
        %2018 = vmatpush1.bf16.msra.mxu0 0
        %2019 = vmatprep.subr.bf16.mxu0 0
        %2020 = vmatpush1.bf16.msra.mxu0 0
        %2021 = vmatprep.subr.bf16.mxu0 0
        %2022 = vmatpush1.bf16.msra.mxu0 0
        %2023 = vmatprep.subr.bf16.mxu0 0
        %2024 = vmatpush1.bf16.msra.mxu0 0
        %2025 = vmatprep.subr.bf16.mxu0 0
        %2026 = vmatpush1.bf16.msra.mxu0 0
        %2027 = vmatprep.subr.bf16.mxu0 0
        %2028 = vmatpush1.bf16.msra.mxu0 0
        %2029 = vmatprep.subr.bf16.mxu0 0
        %2030 = vmatpush1.bf16.msra.mxu0 0
        %2031 = vmatprep.mubr.bf16.mxu0 %v1956
        %2032 = vmatmul.mubr.bf16.gmra.mrb[0].mxu0 %v1952
        %v2033 = vpop.f32.mrb[0].mxu0
        %v2034 = vadd.f32 %v1335, %v2033
        %v2035 = vpop.f32.mrb[0].mxu0
        %v2036 = vpop.f32.mrb[0].mxu0
        %v2037 = vpop.f32.mrb[0].mxu0
        %2038 = vdwg.mxu0
        %v2039 = vmax.f32 %v1993, 0.0
        %v2040 = vmax.f32 %v1995, 0.0
        %v2041 = vmax.f32 %v2034, 0.0
        %s2042 = scalar_lea.vmem %s444, 72 [#allocation5]
        %2043 = vst [vmem:[%s2042] sm:$0xff] %v2039
        %2044 = vst [vmem:[%s2042 + $0x8] sm:$0xff] %v2040
        %2045 = vst.msk [vmem:[%s2042 + $0x10] sm:$0xff] %vm720, %v2041
        %v2046 = vpack.c.bf16 %v2039, %v2039
        %v2047 = vpack.c.bf16 %v2040, %v2040
        %v2048 = vpack.c.bf16 %v2041, %v2041
        %v2050 = vsel %vm556, %v2046, 0
        %v2053 = vsel %vm556, %v2047, 0
        %v2056 = vsel %vm556, %v2048, 0
        %2058 = vmatprep.subr.bf16.mxu0 %v2053
        %2059 = vmatpush1.bf16.msra.mxu0 %v2050
        %2060 = vmatprep.subr.bf16.mxu0 0
        %2061 = vmatpush1.bf16.msra.mxu0 0
        %2062 = vmatprep.subr.bf16.mxu0 0
        %2063 = vmatpush1.bf16.msra.mxu0 0
        %2064 = vmatprep.subr.bf16.mxu0 0
        %2065 = vmatpush1.bf16.msra.mxu0 0
        %2066 = vmatprep.subr.bf16.mxu0 0
        %2067 = vmatpush1.bf16.msra.mxu0 0
        %2068 = vmatprep.subr.bf16.mxu0 0
        %2069 = vmatpush1.bf16.msra.mxu0 0
        %2070 = vmatprep.subr.bf16.mxu0 0
        %2071 = vmatpush1.bf16.msra.mxu0 0
        %2072 = vmatprep.subr.bf16.mxu0 0
        %2073 = vmatpush1.bf16.msra.mxu0 0
        %2074 = vmatprep.subr.bf16.mxu0 0
        %2075 = vmatpush1.bf16.msra.mxu0 0
        %2076 = vmatprep.subr.bf16.mxu0 0
        %2077 = vmatpush1.bf16.msra.mxu0 0
        %2078 = vmatprep.subr.bf16.mxu0 0
        %2079 = vmatpush1.bf16.msra.mxu0 0
        %2080 = vmatprep.subr.bf16.mxu0 0
        %2081 = vmatpush1.bf16.msra.mxu0 0
        %2082 = vmatprep.subr.bf16.mxu0 0
        %2083 = vmatpush1.bf16.msra.mxu0 0
        %2084 = vmatprep.subr.bf16.mxu0 0
        %2085 = vmatpush1.bf16.msra.mxu0 0
        %2086 = vmatprep.subr.bf16.mxu0 0
        %2087 = vmatpush1.bf16.msra.mxu0 0
        %2088 = vmatprep.subr.bf16.mxu0 0
        %2089 = vmatpush1.bf16.msra.mxu0 0
        %2090 = vmatprep.mubr.bf16.mxu0 0
        %2091 = vmatmul.mubr.bf16.gmra.mrb[0].mxu0 %v1441
        %v2092 = vpop.f32.mrb[0].mxu0
        %v2093 = vadd.f32 0.0, %v2092
        %v2094 = vpop.f32.mrb[0].mxu0
        %v2095 = vadd.f32 0.0, %v2094
        %v2096 = vpop.f32.mrb[0].mxu0
        %v2097 = vpop.f32.mrb[0].mxu0
        %2098 = vdwg.mxu0
        %2099 = vmatprep.subr.bf16.mxu0 0
        %2100 = vmatpush1.bf16.msra.mxu0 %v2056
        %2101 = vmatprep.subr.bf16.mxu0 0
        %2102 = vmatpush1.bf16.msra.mxu0 0
        %2103 = vmatprep.subr.bf16.mxu0 0
        %2104 = vmatpush1.bf16.msra.mxu0 0
        %2105 = vmatprep.subr.bf16.mxu0 0
        %2106 = vmatpush1.bf16.msra.mxu0 0
        %2107 = vmatprep.subr.bf16.mxu0 0
        %2108 = vmatpush1.bf16.msra.mxu0 0
        %2109 = vmatprep.subr.bf16.mxu0 0
        %2110 = vmatpush1.bf16.msra.mxu0 0
        %2111 = vmatprep.subr.bf16.mxu0 0
        %2112 = vmatpush1.bf16.msra.mxu0 0
        %2113 = vmatprep.subr.bf16.mxu0 0
        %2114 = vmatpush1.bf16.msra.mxu0 0
        %2115 = vmatprep.subr.bf16.mxu0 0
        %2116 = vmatpush1.bf16.msra.mxu0 0
        %2117 = vmatprep.subr.bf16.mxu0 0
        %2118 = vmatpush1.bf16.msra.mxu0 0
        %2119 = vmatprep.subr.bf16.mxu0 0
        %2120 = vmatpush1.bf16.msra.mxu0 0
        %2121 = vmatprep.subr.bf16.mxu0 0
        %2122 = vmatpush1.bf16.msra.mxu0 0
        %2123 = vmatprep.subr.bf16.mxu0 0
        %2124 = vmatpush1.bf16.msra.mxu0 0
        %2125 = vmatprep.subr.bf16.mxu0 0
        %2126 = vmatpush1.bf16.msra.mxu0 0
        %2127 = vmatprep.subr.bf16.mxu0 0
        %2128 = vmatpush1.bf16.msra.mxu0 0
        %2129 = vmatprep.subr.bf16.mxu0 0
        %2130 = vmatpush1.bf16.msra.mxu0 0
        %2131 = vmatprep.mubr.bf16.mxu0 0
        %2132 = vmatmul.mubr.bf16.gmra.mrb[0].mxu0 %v1441
        %v2133 = vpop.f32.mrb[0].mxu0
        %v2134 = vadd.f32 0.0, %v2133
        %v2135 = vpop.f32.mrb[0].mxu0
        %v2136 = vpop.f32.mrb[0].mxu0
        %v2137 = vpop.f32.mrb[0].mxu0
        %2138 = vdwg.mxu0
        %v2139 = vtanh.pop %v2093
        %v2140 = vtanh.pop %v2095
        %v2141 = vtanh.pop %v2134
        %v2144 = vcombine.low %v2139, %v2140
        %s2146 = scalar_lea.vmem %s469, 36
        %2147 = vst [vmem:[%s2146] sm:$0x77] %v2144
        %2148 = vst.msk [vmem:[%s2146 + $0x8] sm:$0x7] %vm1541, %v2141
        %s2149 = sand.u32 %s267, 1
        %s2150 = scalar_lea.sflag [#allocation4], %s2149
        %s2151 = sand.u32 %s267, 1
        %s2152 = smul.addr %s2151, 96
        %s2153 = scalar_lea.vmem [#allocation5], %s2152
        %p2154 = scmp.lt.s32.totalorder %s29, 1
        %s2155 = scalar_select %p2154, %s29, 1
        %s2156 = smul.addr %s2155, 12
        %s2157 = smul.addr %s2156, 4
        %s2158 = scalar_lea.vmem %s11, %s2157
        // Predicated region
        $region65: #{tpu_custom_call.1} parent=59 // pred_check
          %p2159 = pneg %p277
        $region66: #{tpu_custom_call.1} parent=59 // pred_check_branch
          %2161 = sbr.rel (%p2159) target = $region68
        $region67: #{tpu_custom_call.1} parent=59 // pred_region
          %s2163 = ssub.s32 1536, 1536
          %2164 = vsyncadd %s2150, %s2163
          %s2165 = smul.addr %s29, 12
          %s2166 = smul.addr %s2165, 128
          %s2167 = scalar_lea.hbm %s10, %s2166
          %s2168 = sshll.u32 %s2153, 4
          %s2169 = int_to_ptr.vmem [resolvable:$true] %s2168
          %2174 = dma.vmem_to_hbm [thread:$0]  %s2169, 1536, %s2167, %s2150, 384, 384, 24
        $region68: #{tpu_custom_call.1} parent=59 // pred_fallthru
          _
        // Predicated region
        $region69: #{tpu_custom_call.1} parent=59 // pred_check
          %p2175 = pneg %p303
        $region70: #{tpu_custom_call.1} parent=59 // pred_check_branch
          %2177 = sbr.rel (%p2175) target = $region72
        $region71: #{tpu_custom_call.1} parent=59 // pred_region
          _
        $region72: #{tpu_custom_call.1} parent=59 // pred_fallthru
          _
      $region60: #{tpu_custom_call.1} parent=5 // pred_fallthru
        _
      %p2178 = scmp.le.s32.totalorder 2, %s24
      // Predicated region
      $region73: #{tpu_custom_call.1} parent=5 // pred_check
        %p2179 = pneg %p2178
      $region74: #{tpu_custom_call.1} parent=5 // pred_check_branch
        %2181 = sbr.rel (%p2179) target = $region76
      $region75: #{tpu_custom_call.1} parent=5 // pred_region
        %s2182 = ssub.s32 %s24, 2
        // Predicated region
        $region77: #{tpu_custom_call.1} parent=75 // pred_check
          %p2183 = pneg %p283
        $region78: #{tpu_custom_call.1} parent=75 // pred_check_branch
          %2185 = sbr.rel (%p2183) target = $region80
        $region79: #{tpu_custom_call.1} parent=75 // pred_region
          %s2186 = sand.u32 %s268, 1
          %s2187 = scalar_lea.sflag [#allocation4], %s2186
          %s2188 = sand.u32 %s268, 1
          %s2189 = smul.addr %s2188, 96
          %s2190 = scalar_lea.vmem [#allocation5], %s2189
          %2191 = dma.done %s2187, 1536
        $region80: #{tpu_custom_call.1} parent=75 // pred_fallthru
          _
        // Predicated region
        $region81: #{tpu_custom_call.1} parent=75 // pred_check
          %p2192 = pneg %p309
        $region82: #{tpu_custom_call.1} parent=75 // pred_check_branch
          %2194 = sbr.rel (%p2192) target = $region84
        $region83: #{tpu_custom_call.1} parent=75 // pred_region
          %p2195 = scmp.lt.s32.totalorder %s30, 1
          %s2196 = scalar_select %p2195, %s30, 1
          %s2197 = smul.addr %s2196, 12
          %s2198 = smul.addr %s2197, 4
          %s2199 = scalar_lea.vmem %s11, %s2198
        $region84: #{tpu_custom_call.1} parent=75 // pred_fallthru
          _
      $region76: #{tpu_custom_call.1} parent=5 // pred_fallthru
        _
    $region6: #{tpu_custom_call.1} parent=1 // loop_footer
      %s28 = sadd.s32 1, %s24
    $region7: #{tpu_custom_call.1} parent=1 // loop_footer_branch
      %23 = sbr.rel target = $region3
    $region8: #{tpu_custom_call.1} parent=1 // loop_exit
      _
    %2200 = vsyncpa [#allocation3], 1
    %s2201 = scalar_lea.sflag [#allocation3], 1
    %2202 = vsyncpa %s2201, 1
    %2203 = vsyncpa [#allocation4], 1
    %s2204 = scalar_lea.sflag [#allocation4], 1
    %2205 = vsyncpa %s2204, 1

</llo_original>
